<compile_context>
chip_gen: v5e
topology: v5e:2x2
jax: 0.10.0
libtpu: 0.0.40
codegen_flags: <defaults>
</compile_context>

<pallas_src>
import math

import jax
import jax.numpy as jnp
from jax import lax
from jax.experimental import pallas as pl
from jax.experimental.pallas import tpu as pltpu

WIN = 5                 # kornia window_size=5
PAD = WIN // 2
SIGMA = 1.5             # kornia default gaussian sigma
MAX_VAL = 1.0
C1 = (0.01 * MAX_VAL) ** 2
C2 = (0.03 * MAX_VAL) ** 2


def _gauss_weights():
    xs = [i - (WIN // 2) for i in range(WIN)]
    g = [math.exp(-(v * v) / (2.0 * SIGMA * SIGMA)) for v in xs]
    s = sum(g)
    return [v / s for v in g]


GW = _gauss_weights()   # normalized 1-D gaussian taps (static Python floats)


def _filter_matrix(n):
    """(n, n) matrix M with out = img @ M == reflect-pad + 5-tap gaussian
    along that axis (M[src, dst] = sum of taps mapping src -> dst)."""
    K = [[0.0] * n for _ in range(n)]
    for dst in range(n):
        for j in range(WIN):
            src = dst + j - PAD
            if src < 0:                 # jnp.pad(mode='reflect') semantics
                src = -src
            elif src >= n:
                src = 2 * (n - 1) - src
            K[src][dst] += GW[j]
    return jnp.asarray(K, dtype=jnp.float32)


def ssim_loss_kernel(kw_ref, kv_ref, x_ref, y_ref, out_ref):
    P, H, W = x_ref.shape
    M = 5 * P                                   # x, y, xx, yy, xy stacked

    x = x_ref[...].astype(jnp.float32)          # (P, H, W)
    y = y_ref[...].astype(jnp.float32)
    kw = kw_ref[...]                            # (W, W)  img @ kw = horiz filter
    # kv[q, h] = weight of input row h for output row q; broadcast ONCE for
    # the batched vertical matmul (hoisted - JAX does not CSE broadcasts).
    kv_b = jnp.broadcast_to(kv_ref[...][None, :, :], (M, H, H))

    # Stack all five filter targets and filter them in a single fused pass.
    stacked = jnp.concatenate([x, y, x * x, y * y, x * y], axis=0)  # (M, H, W)

    # Horizontal pass on the MXU: one (M*H, W) @ (W, W) matmul.
    tmp = jnp.dot(stacked.reshape(M * H, W), kw,
                  preferred_element_type=jnp.float32).reshape(M, H, W)
    # Vertical pass as one batched matmul (same pattern as flash-attn PV).
    f = jnp.einsum('mqh,mhw->mqw', kv_b, tmp,
                   preferred_element_type=jnp.float32)              # (M, H, W)

    mu1 = f[0 * P:1 * P]
    mu2 = f[1 * P:2 * P]
    fxx = f[2 * P:3 * P]
    fyy = f[3 * P:4 * P]
    fxy = f[4 * P:5 * P]

    mu1_sq = mu1 * mu1
    mu2_sq = mu2 * mu2
    mu1_mu2 = mu1 * mu2

    sigma1_sq = fxx - mu1_sq
    sigma2_sq = fyy - mu2_sq
    sigma12 = fxy - mu1_mu2

    num = (2.0 * mu1_mu2 + C1) * (2.0 * sigma12 + C2)
    den = (mu1_sq + mu2_sq + C1) * (sigma1_sq + sigma2_sq + C2)
    ssim_map = num * pl.reciprocal(den)         # den >= C1*C2 > 0, matches kornia

    # kornia: loss = clamp((1 - ssim) / 2, 0, 1)
    loss_map = jnp.clip((1.0 - ssim_map) * 0.5, 0.0, 1.0)

    # Per-block partial sum, broadcast into a lane-dense (1, 8, 128) block.
    out_ref[...] = jnp.broadcast_to(jnp.sum(loss_map), out_ref.shape)


def _pick_planes_per_block(nc, h, w, budget_bytes=20 << 20):
    """Largest divisor of nc whose per-block working set fits the budget."""
    best = 1
    for p in range(1, nc + 1):
        if nc % p:
            continue
        # ~32 live f32 (P,H,W) arrays (double-buffered inputs, f32 casts,
        # products, 5x stacked / tmp / filtered, SSIM intermediates) plus the
        # broadcast vertical filter matrix (5P, H, H).
        need = p * h * w * 4 * 32 + 5 * p * h * h * 4
        if need <= budget_bytes:
            best = p
    return best


def ssim_loss(x, gt, loss_weight=1.0):
    """x, gt: (N, C, H, W) arrays in [0, 1]. Returns scalar loss."""
    N, C, H, W = x.shape
    NC = N * C

    xr = x.reshape(NC, H, W)          # keep input dtype; cast in-kernel
    yr = gt.reshape(NC, H, W)

    kw = _filter_matrix(W)            # (W, W): horizontal (img @ kw)
    kv = _filter_matrix(H).T          # (H, H): vertical   (kv @ img)

    P = _pick_planes_per_block(NC, H, W)
    G = NC // P

    partials = pl.pallas_call(
        ssim_loss_kernel,
        out_shape=jax.ShapeDtypeStruct((G, 8, 128), jnp.float32),
        grid_spec=pltpu.PrefetchScalarGridSpec(
            num_scalar_prefetch=0,
            grid=(G,),
            in_specs=[
                pl.BlockSpec((W, W), lambda i: (0, 0)),
                pl.BlockSpec((H, H), lambda i: (0, 0)),
                pl.BlockSpec((P, H, W), lambda i: (i, 0, 0)),
                pl.BlockSpec((P, H, W), lambda i: (i, 0, 0)),
            ],
            out_specs=pl.BlockSpec((1, 8, 128), lambda i: (i, 0, 0)),
        ),
        compiler_params=pltpu.CompilerParams(
            dimension_semantics=("parallel",),
            vmem_limit_bytes=48 << 20),
    )(kw, kv, xr, yr)

    total = jnp.sum(partials[:, 0, 0])
    # mean over (C, H, W) per sample then mean over batch == mean over all.
    return (total / (NC * H * W)) * loss_weight


# -------- pure-JAX reference (depthwise conv) for a correctness check --------
def _ref_ssim_loss(x, gt, loss_weight=1.0):
    N, C, H, W = x.shape
    g1 = jnp.asarray(GW, dtype=jnp.float32)
    k2 = jnp.outer(g1, g1)                                  # (5, 5), sums to 1
    kern = jnp.broadcast_to(k2, (C, 1, WIN, WIN))

    def filt(img):
        imgp = jnp.pad(img, ((0, 0), (0, 0), (PAD, PAD), (PAD, PAD)),
                       mode='reflect')
        return lax.conv_general_dilated(
            imgp, kern, (1, 1), 'VALID',
            feature_group_count=C,
            dimension_numbers=('NCHW', 'OIHW', 'NCHW'))

    x = x.astype(jnp.float32)
    gt = gt.astype(jnp.float32)
    mu1, mu2 = filt(x), filt(gt)
    mu1_sq, mu2_sq, mu1_mu2 = mu1 * mu1, mu2 * mu2, mu1 * mu2
    s1 = filt(x * x) - mu1_sq
    s2 = filt(gt * gt) - mu2_sq
    s12 = filt(x * gt) - mu1_mu2
    num = (2.0 * mu1_mu2 + C1) * (2.0 * s12 + C2)
    den = (mu1_sq + mu2_sq + C1) * (s1 + s2 + C2)
    ssim_map = num / den
    loss = jnp.clip((1.0 - ssim_map) * 0.5, 0.0, 1.0)
    return jnp.mean(jnp.mean(loss, axis=(-1, -2, -3))) * loss_weight


if __name__ == "__main__":
    key = jax.random.PRNGKey(0)
    kx, kg = jax.random.split(key)
    N, C, H, W = 2, 4, 16, 16
    x = jax.random.uniform(kx, (N, C, H, W), dtype=jnp.float32)
    gt = jax.random.uniform(kg, (N, C, H, W), dtype=jnp.float32)

    loss = ssim_loss(x, gt, loss_weight=1.0)
    loss = jax.block_until_ready(loss)

    ref = jax.block_until_ready(_ref_ssim_loss(x, gt, loss_weight=1.0))
    assert jnp.allclose(loss, ref, rtol=1e-4, atol=1e-5), (loss, ref)

    print("KERNEL_OK")
</pallas_src>

<mosaic_0001>
module attributes {stable_mosaic.version = 11 : i64} {
  func.func @ssim_loss_kernel(%arg0: i32, %arg1: memref<16x16xf32, #tpu.memory_space<vmem>>, %arg2: memref<16x16xf32, #tpu.memory_space<vmem>>, %arg3: memref<8x16x16xf32, #tpu.memory_space<vmem>>, %arg4: memref<8x16x16xf32, #tpu.memory_space<vmem>>, %arg5: memref<1x8x128xf32, #tpu.memory_space<vmem>>) attributes {dimension_semantics = [#tpu.dimension_semantics<parallel>], iteration_bounds = array<i64: 1>, scalar_prefetch = 0 : i64, scratch_operands = 0 : i64, tpu.core_type = #tpu.core_type<tc>, window_params = [{pipeline_mode = #tpu.pipeline_mode<synchronous>, transform_indices = @transform_0, window_bounds = array<i64: 16, 16>}, {pipeline_mode = #tpu.pipeline_mode<synchronous>, transform_indices = @transform_1, window_bounds = array<i64: 16, 16>}, {transform_indices = @transform_2, window_bounds = array<i64: 8, 16, 16>}, {transform_indices = @transform_3, window_bounds = array<i64: 8, 16, 16>}, {transform_indices = @transform_4, window_bounds = array<i64: 1, 8, 128>}]} {
    %c0 = arith.constant 0 : index
    %c0_0 = arith.constant 0 : index
    %c0_1 = arith.constant 0 : index
    %0 = vector.load %arg3[%c0, %c0_0, %c0_1] : memref<8x16x16xf32, #tpu.memory_space<vmem>>, vector<8x16x16xf32>
    %c0_2 = arith.constant 0 : index
    %c0_3 = arith.constant 0 : index
    %c0_4 = arith.constant 0 : index
    %1 = vector.load %arg4[%c0_2, %c0_3, %c0_4] : memref<8x16x16xf32, #tpu.memory_space<vmem>>, vector<8x16x16xf32>
    %c0_5 = arith.constant 0 : index
    %c0_6 = arith.constant 0 : index
    %2 = vector.load %arg1[%c0_5, %c0_6] : memref<16x16xf32, #tpu.memory_space<vmem>>, vector<16x16xf32>
    %c0_7 = arith.constant 0 : index
    %c0_8 = arith.constant 0 : index
    %3 = vector.load %arg2[%c0_7, %c0_8] : memref<16x16xf32, #tpu.memory_space<vmem>>, vector<16x16xf32>
    %4 = vector.shape_cast %3 : vector<16x16xf32> to vector<1x16x16xf32>
    %5 = vector.shape_cast %4 : vector<1x16x16xf32> to vector<1x16x16xf32>
    %6 = vector.broadcast %5 : vector<1x16x16xf32> to vector<40x16x16xf32>
    %7 = arith.mulf %0, %0 : vector<8x16x16xf32>
    %8 = arith.mulf %1, %1 : vector<8x16x16xf32>
    %9 = arith.mulf %0, %1 : vector<8x16x16xf32>
    %10 = tpu.concatenate %0, %1, %7, %8, %9 in 0 : vector<8x16x16xf32>, vector<8x16x16xf32>, vector<8x16x16xf32>, vector<8x16x16xf32>, vector<8x16x16xf32> -> vector<40x16x16xf32>
    %11 = vector.shape_cast %10 : vector<40x16x16xf32> to vector<640x16xf32>
    %cst = arith.constant dense<0.000000e+00> : vector<640x16xf32>
    %12 = tpu.matmul %11, %2, %cst {dimension_numbers = #tpu.dot_dimension_numbers<[1], [0], [0], [1], [0, 0, 1, 1], [], []>} : vector<640x16xf32>, vector<16x16xf32>, vector<640x16xf32> -> vector<640x16xf32>
    %13 = vector.shape_cast %12 : vector<640x16xf32> to vector<40x16x16xf32>
    "tpu.trace_start"() <{level = 10 : i32, message = "mqh,mhw->mqw"}> : () -> ()
    %cst_9 = arith.constant dense<0.000000e+00> : vector<40x16x16xf32>
    %14 = tpu.matmul %6, %13, %cst_9 {dimension_numbers = #tpu.dot_dimension_numbers<[2], [1], [1], [2], [0, 0, 0, 1, 1, 2], [0], [0]>} : vector<40x16x16xf32>, vector<40x16x16xf32>, vector<40x16x16xf32> -> vector<40x16x16xf32>
    "tpu.trace_stop"() : () -> ()
    %15 = vector.extract_strided_slice %14 {offsets = [0, 0, 0], sizes = [8, 16, 16], strides = [1, 1, 1]} : vector<40x16x16xf32> to vector<8x16x16xf32>
    %16 = vector.extract_strided_slice %14 {offsets = [8, 0, 0], sizes = [8, 16, 16], strides = [1, 1, 1]} : vector<40x16x16xf32> to vector<8x16x16xf32>
    %17 = vector.extract_strided_slice %14 {offsets = [16, 0, 0], sizes = [8, 16, 16], strides = [1, 1, 1]} : vector<40x16x16xf32> to vector<8x16x16xf32>
    %18 = vector.extract_strided_slice %14 {offsets = [24, 0, 0], sizes = [8, 16, 16], strides = [1, 1, 1]} : vector<40x16x16xf32> to vector<8x16x16xf32>
    %19 = vector.extract_strided_slice %14 {offsets = [32, 0, 0], sizes = [8, 16, 16], strides = [1, 1, 1]} : vector<40x16x16xf32> to vector<8x16x16xf32>
    %20 = arith.mulf %15, %15 : vector<8x16x16xf32>
    %21 = arith.mulf %16, %16 : vector<8x16x16xf32>
    %22 = arith.mulf %15, %16 : vector<8x16x16xf32>
    %23 = arith.subf %17, %20 : vector<8x16x16xf32>
    %24 = arith.subf %18, %21 : vector<8x16x16xf32>
    %25 = arith.subf %19, %22 : vector<8x16x16xf32>
    %cst_10 = arith.constant 2.000000e+00 : f32
    %26 = vector.broadcast %cst_10 : f32 to vector<8x16x16xf32>
    %27 = arith.mulf %26, %22 : vector<8x16x16xf32>
    %cst_11 = arith.constant 9.99999974E-5 : f32
    %28 = vector.broadcast %cst_11 : f32 to vector<8x16x16xf32>
    %29 = arith.addf %27, %28 : vector<8x16x16xf32>
    %cst_12 = arith.constant 2.000000e+00 : f32
    %30 = vector.broadcast %cst_12 : f32 to vector<8x16x16xf32>
    %31 = arith.mulf %30, %25 : vector<8x16x16xf32>
    %cst_13 = arith.constant 8.99999984E-4 : f32
    %32 = vector.broadcast %cst_13 : f32 to vector<8x16x16xf32>
    %33 = arith.addf %31, %32 : vector<8x16x16xf32>
    %34 = arith.mulf %29, %33 : vector<8x16x16xf32>
    %35 = arith.addf %20, %21 : vector<8x16x16xf32>
    %cst_14 = arith.constant 9.99999974E-5 : f32
    %36 = vector.broadcast %cst_14 : f32 to vector<8x16x16xf32>
    %37 = arith.addf %35, %36 : vector<8x16x16xf32>
    %38 = arith.addf %23, %24 : vector<8x16x16xf32>
    %cst_15 = arith.constant 8.99999984E-4 : f32
    %39 = vector.broadcast %cst_15 : f32 to vector<8x16x16xf32>
    %40 = arith.addf %38, %39 : vector<8x16x16xf32>
    %41 = arith.mulf %37, %40 : vector<8x16x16xf32>
    %42 = tpu.reciprocal %41 : vector<8x16x16xf32> -> vector<8x16x16xf32>
    %43 = arith.mulf %34, %42 : vector<8x16x16xf32>
    %cst_16 = arith.constant 1.000000e+00 : f32
    %44 = vector.broadcast %cst_16 : f32 to vector<8x16x16xf32>
    %45 = arith.subf %44, %43 : vector<8x16x16xf32>
    %cst_17 = arith.constant 5.000000e-01 : f32
    %46 = vector.broadcast %cst_17 : f32 to vector<8x16x16xf32>
    %47 = arith.mulf %45, %46 : vector<8x16x16xf32>
    %cst_18 = arith.constant 0.000000e+00 : f32
    %cst_19 = arith.constant 1.000000e+00 : f32
    %48 = vector.broadcast %cst_18 : f32 to vector<8x16x16xf32>
    %49 = arith.maximumf %48, %47 : vector<8x16x16xf32>
    %50 = vector.broadcast %cst_19 : f32 to vector<8x16x16xf32>
    %51 = arith.minimumf %50, %49 : vector<8x16x16xf32>
    %52 = vector.shape_cast %51 : vector<8x16x16xf32> to vector<1x8x16x16xf32>
    %cst_20 = arith.constant dense<0.000000e+00> : vector<1xf32>
    %53 = vector.multi_reduction <add>, %52, %cst_20 [1, 2, 3] : vector<1x8x16x16xf32> to vector<1xf32>
    %54 = vector.shape_cast %53 : vector<1xf32> to vector<1x1x1x1xf32>
    %55 = vector.extract %54[0, 0, 0, 0] : f32 from vector<1x1x1x1xf32>
    %56 = vector.broadcast %55 : f32 to vector<1x8x128xf32>
    %c0_21 = arith.constant 0 : index
    %c0_22 = arith.constant 0 : index
    %c0_23 = arith.constant 0 : index
    %57 = vector.load %arg5[%c0_21, %c0_22, %c0_23] : memref<1x8x128xf32, #tpu.memory_space<vmem>>, vector<1x8x128xf32>
    tpu.vector_store %arg5[%c0_21, %c0_22, %c0_23], %56 {strides = array<i32>} : memref<1x8x128xf32, #tpu.memory_space<vmem>>, vector<1x8x128xf32>,
    return
  }
  func.func @transform_0(%arg0: i32) -> (i32, i32) {
    %c0_i32 = arith.constant 0 : i32
    %c0_i32_0 = arith.constant 0 : i32
    %c0_i32_1 = arith.constant 0 : i32
    return %c0_i32, %c0_i32_0 : i32, i32
  }
  func.func @transform_1(%arg0: i32) -> (i32, i32) {
    %c0_i32 = arith.constant 0 : i32
    %c0_i32_0 = arith.constant 0 : i32
    %c0_i32_1 = arith.constant 0 : i32
    return %c0_i32, %c0_i32_0 : i32, i32
  }
  func.func @transform_2(%arg0: i32) -> (i32, i32, i32) {
    %c0_i32 = arith.constant 0 : i32
    %c0_i32_0 = arith.constant 0 : i32
    %c0_i32_1 = arith.constant 0 : i32
    return %arg0, %c0_i32, %c0_i32_0 : i32, i32, i32
  }
  func.func @transform_3(%arg0: i32) -> (i32, i32, i32) {
    %c0_i32 = arith.constant 0 : i32
    %c0_i32_0 = arith.constant 0 : i32
    %c0_i32_1 = arith.constant 0 : i32
    return %arg0, %c0_i32, %c0_i32_0 : i32, i32, i32
  }
  func.func @transform_4(%arg0: i32) -> (i32, i32, i32) {
    %c0_i32 = arith.constant 0 : i32
    %c0_i32_0 = arith.constant 0 : i32
    %c0_i32_1 = arith.constant 0 : i32
    return %arg0, %c0_i32, %c0_i32_0 : i32, i32, i32
  }
}

</mosaic_0001>

<llo_original>
// kernel: tpu_custom_call.1
$region0: #{tpu_custom_call.1}
  #allocation0 [shape = 'u32[]', space=smem, size = 0x4, offset = 0x4, fixed_abs, tag = 'smem constant byte address 0x4 - core index']
  #allocation1 [shape = 'u32[72,128]{1,0:T(1,128)}', space=vmem, size = 0x9000, scoped, tag = 'internal scratch']
  %s0 = inlined_call_operand.hbm [shape: f32[16,16], index: 0, kind: input, shape index: {}]
  %s1 = inlined_call_operand.hbm [shape: f32[16,16], index: 1, kind: input, shape index: {}]
  %s2 = inlined_call_operand.hbm [shape: f32[8,16,16], index: 2, kind: input, shape index: {}]
  %s3 = inlined_call_operand.hbm [shape: f32[8,16,16], index: 3, kind: input, shape index: {}]
  %s4 = inlined_call_operand.hbm [shape: f32[1,8,128], index: 4, kind: output, shape index: {}]
  %s5 = sld [smem:[#allocation0]]
  $region42: #{tpu_custom_call.1} parent=0
    _
  %s7 = ssub.s32 1, %s5
  %s8 = scalar_select 0, %s7, %s5
  $region1: #{tpu_custom_call.1} parent=0
    #allocation2 [shape = 'u8[8192]{0}', space=vmem, size = 0x2000, scoped, tag = 'input window, operand 0, single buffered']
    #allocation3 [shape = 's32[1]{0}', space=sflag, size = 0x4, scoped, tag = 'scoped memory for tpu_custom_call.1']
    #allocation4 [shape = 's32[1]{0}', space=sflag, size = 0x4, scoped, tag = 'scoped memory for tpu_custom_call.1']
    #allocation5 [shape = 'u8[8192]{0}', space=vmem, size = 0x2000, scoped, tag = 'input window, operand 1, single buffered']
    #allocation6 [shape = 's32[1]{0}', space=sflag, size = 0x4, scoped, tag = 'scoped memory for tpu_custom_call.1']
    #allocation7 [shape = 'u8[65536]{0}', space=vmem, size = 0x10000, scoped, tag = 'input window, operand 2, single buffered']
    #allocation8 [shape = 'u8[65536]{0}', space=vmem, size = 0x10000, scoped, tag = 'input window, operand 3, single buffered']
    #allocation9 [shape = 's32[1]{0}', space=sflag, size = 0x4, scoped, tag = 'scoped memory for tpu_custom_call.1']
    #allocation10 [shape = 'u8[4096]{0}', space=vmem, size = 0x1000, scoped, tag = 'output window, operand 0, single buffered']
    %9 = vsyncpa [#allocation3], 0
    %10 = vsyncpa [#allocation6], 0
    %11 = vsyncpa [#allocation9], 0
    %12 = vsyncpa [#allocation4], 0
    // Predicated region
    $region2: #{tpu_custom_call.1} parent=1 // pred_check
      _
    $region3: #{tpu_custom_call.1} parent=1 // pred_check_branch
      %14 = sbr.rel (0) target = $region5
    $region4: #{tpu_custom_call.1} parent=1 // pred_region
      %16 = vsyncadd [#allocation3], 0
      %s17 = sshll.u32 %s0, 4
      %s18 = int_to_ptr.hbm [resolvable:$true] %s17
      %s19 = sshll.u32 [#allocation2], 4
      %s20 = int_to_ptr.vmem [resolvable:$true] %s19
      %25 = dma.hbm_to_vmem [thread:$0]  %s18, 256, %s20, [#allocation3], 128, 128, 8
    $region5: #{tpu_custom_call.1} parent=1 // pred_fallthru
      _
    // Predicated region
    $region6: #{tpu_custom_call.1} parent=1 // pred_check
      _
    $region7: #{tpu_custom_call.1} parent=1 // pred_check_branch
      %27 = sbr.rel (0) target = $region9
    $region8: #{tpu_custom_call.1} parent=1 // pred_region
      %29 = vsyncadd [#allocation6], 0
      %s30 = sshll.u32 %s1, 4
      %s31 = int_to_ptr.hbm [resolvable:$true] %s30
      %s32 = sshll.u32 [#allocation5], 4
      %s33 = int_to_ptr.vmem [resolvable:$true] %s32
      %38 = dma.hbm_to_vmem [thread:$0]  %s31, 256, %s33, [#allocation6], 128, 128, 8
    $region9: #{tpu_custom_call.1} parent=1 // pred_fallthru
      _
    // Predicated region
    $region10: #{tpu_custom_call.1} parent=1 // pred_check
      _
    $region11: #{tpu_custom_call.1} parent=1 // pred_check_branch
      %40 = sbr.rel (0) target = $region13
    $region12: #{tpu_custom_call.1} parent=1 // pred_region
      %42 = vsyncadd [#allocation6], 0
      %s43 = sshll.u32 %s2, 4
      %s44 = int_to_ptr.hbm [resolvable:$true] %s43
      %s45 = sshll.u32 [#allocation7], 4
      %s46 = int_to_ptr.vmem [resolvable:$true] %s45
      %51 = dma.hbm_to_vmem [thread:$0]  %s44, 2048, %s46, [#allocation6], 128, 128, 8
    $region13: #{tpu_custom_call.1} parent=1 // pred_fallthru
      _
    // Predicated region
    $region14: #{tpu_custom_call.1} parent=1 // pred_check
      _
    $region15: #{tpu_custom_call.1} parent=1 // pred_check_branch
      %53 = sbr.rel (0) target = $region17
    $region16: #{tpu_custom_call.1} parent=1 // pred_region
      %55 = vsyncadd [#allocation9], 0
      %s56 = sshll.u32 %s3, 4
      %s57 = int_to_ptr.hbm [resolvable:$true] %s56
      %s58 = sshll.u32 [#allocation8], 4
      %s59 = int_to_ptr.vmem [resolvable:$true] %s58
      %64 = dma.hbm_to_vmem [thread:$0]  %s57, 2048, %s59, [#allocation9], 128, 128, 8
    $region17: #{tpu_custom_call.1} parent=1 // pred_fallthru
      _
    // Predicated region
    $region18: #{tpu_custom_call.1} parent=1 // pred_check
      _
    $region19: #{tpu_custom_call.1} parent=1 // pred_check_branch
      %66 = sbr.rel (0) target = $region21
    $region20: #{tpu_custom_call.1} parent=1 // pred_region
      %68 = dma.done [#allocation3], 256
    $region21: #{tpu_custom_call.1} parent=1 // pred_fallthru
      _
    // Predicated region
    $region22: #{tpu_custom_call.1} parent=1 // pred_check
      _
    $region23: #{tpu_custom_call.1} parent=1 // pred_check_branch
      %70 = sbr.rel (0) target = $region25
    $region24: #{tpu_custom_call.1} parent=1 // pred_region
      %72 = dma.done [#allocation6], 256
    $region25: #{tpu_custom_call.1} parent=1 // pred_fallthru
      _
    // Predicated region
    $region26: #{tpu_custom_call.1} parent=1 // pred_check
      _
    $region27: #{tpu_custom_call.1} parent=1 // pred_check_branch
      %74 = sbr.rel (0) target = $region29
    $region28: #{tpu_custom_call.1} parent=1 // pred_region
      %76 = dma.done [#allocation6], 2048
    $region29: #{tpu_custom_call.1} parent=1 // pred_fallthru
      _
    // Predicated region
    $region30: #{tpu_custom_call.1} parent=1 // pred_check
      _
    $region31: #{tpu_custom_call.1} parent=1 // pred_check_branch
      %78 = sbr.rel (0) target = $region33
    $region32: #{tpu_custom_call.1} parent=1 // pred_region
      %80 = dma.done [#allocation9], 2048
    $region33: #{tpu_custom_call.1} parent=1 // pred_fallthru
      _
    %v81 = vld [vmem:[#allocation7] sm:$0xff]
    %v82 = vld [vmem:[#allocation7 + $0x8] sm:$0xff]
    %v83 = vld [vmem:[#allocation7 + $0x10] sm:$0xff]
    %v84 = vld [vmem:[#allocation7 + $0x18] sm:$0xff]
    %v85 = vld [vmem:[#allocation7 + $0x20] sm:$0xff]
    %v86 = vld [vmem:[#allocation7 + $0x28] sm:$0xff]
    %v87 = vld [vmem:[#allocation7 + $0x30] sm:$0xff]
    %v88 = vld [vmem:[#allocation7 + $0x38] sm:$0xff]
    %v89 = vld [vmem:[#allocation7 + $0x40] sm:$0xff]
    %v90 = vld [vmem:[#allocation7 + $0x48] sm:$0xff]
    %v91 = vld [vmem:[#allocation7 + $0x50] sm:$0xff]
    %v92 = vld [vmem:[#allocation7 + $0x58] sm:$0xff]
    %v93 = vld [vmem:[#allocation7 + $0x60] sm:$0xff]
    %v94 = vld [vmem:[#allocation7 + $0x68] sm:$0xff]
    %v95 = vld [vmem:[#allocation7 + $0x70] sm:$0xff]
    %v96 = vld [vmem:[#allocation7 + $0x78] sm:$0xff]
    %v97 = vld [vmem:[#allocation8] sm:$0xff]
    %v98 = vld [vmem:[#allocation8 + $0x8] sm:$0xff]
    %v99 = vld [vmem:[#allocation8 + $0x10] sm:$0xff]
    %v100 = vld [vmem:[#allocation8 + $0x18] sm:$0xff]
    %v101 = vld [vmem:[#allocation8 + $0x20] sm:$0xff]
    %v102 = vld [vmem:[#allocation8 + $0x28] sm:$0xff]
    %v103 = vld [vmem:[#allocation8 + $0x30] sm:$0xff]
    %v104 = vld [vmem:[#allocation8 + $0x38] sm:$0xff]
    %v105 = vld [vmem:[#allocation8 + $0x40] sm:$0xff]
    %v106 = vld [vmem:[#allocation8 + $0x48] sm:$0xff]
    %v107 = vld [vmem:[#allocation8 + $0x50] sm:$0xff]
    %v108 = vld [vmem:[#allocation8 + $0x58] sm:$0xff]
    %v109 = vld [vmem:[#allocation8 + $0x60] sm:$0xff]
    %v110 = vld [vmem:[#allocation8 + $0x68] sm:$0xff]
    %v111 = vld [vmem:[#allocation8 + $0x70] sm:$0xff]
    %v112 = vld [vmem:[#allocation8 + $0x78] sm:$0xff]
    %v113 = vld [vmem:[#allocation2] sm:$0xff]
    %v114 = vld [vmem:[#allocation2 + $0x8] sm:$0xff]
    %v115 = vld [vmem:[#allocation5] sm:$0xff]
    %v116 = vld [vmem:[#allocation5 + $0x8] sm:$0xff]
    %v117 = vmul.f32 %v81, %v81
    %v118 = vmul.f32 %v82, %v82
    %v119 = vmul.f32 %v83, %v83
    %v120 = vmul.f32 %v84, %v84
    %v121 = vmul.f32 %v85, %v85
    %v122 = vmul.f32 %v86, %v86
    %v123 = vmul.f32 %v87, %v87
    %v124 = vmul.f32 %v88, %v88
    %v125 = vmul.f32 %v89, %v89
    %v126 = vmul.f32 %v90, %v90
    %v127 = vmul.f32 %v91, %v91
    %v128 = vmul.f32 %v92, %v92
    %v129 = vmul.f32 %v93, %v93
    %v130 = vmul.f32 %v94, %v94
    %v131 = vmul.f32 %v95, %v95
    %v132 = vmul.f32 %v96, %v96
    %v133 = vmul.f32 %v97, %v97
    %v134 = vmul.f32 %v98, %v98
    %v135 = vmul.f32 %v99, %v99
    %v136 = vmul.f32 %v100, %v100
    %v137 = vmul.f32 %v101, %v101
    %v138 = vmul.f32 %v102, %v102
    %v139 = vmul.f32 %v103, %v103
    %v140 = vmul.f32 %v104, %v104
    %v141 = vmul.f32 %v105, %v105
    %v142 = vmul.f32 %v106, %v106
    %v143 = vmul.f32 %v107, %v107
    %v144 = vmul.f32 %v108, %v108
    %v145 = vmul.f32 %v109, %v109
    %v146 = vmul.f32 %v110, %v110
    %v147 = vmul.f32 %v111, %v111
    %v148 = vmul.f32 %v112, %v112
    %v149 = vmul.f32 %v81, %v97
    %v150 = vmul.f32 %v82, %v98
    %v151 = vmul.f32 %v83, %v99
    %v152 = vmul.f32 %v84, %v100
    %v153 = vmul.f32 %v85, %v101
    %v154 = vmul.f32 %v86, %v102
    %v155 = vmul.f32 %v87, %v103
    %v156 = vmul.f32 %v88, %v104
    %v157 = vmul.f32 %v89, %v105
    %v158 = vmul.f32 %v90, %v106
    %v159 = vmul.f32 %v91, %v107
    %v160 = vmul.f32 %v92, %v108
    %v161 = vmul.f32 %v93, %v109
    %v162 = vmul.f32 %v94, %v110
    %v163 = vmul.f32 %v95, %v111
    %v164 = vmul.f32 %v96, %v112
    %vm165 = vcmask 130048
    %v167 = vsel %vm165, %v81, 0
    %v170 = vsel %vm165, %v82, 0
    %v173 = vsel %vm165, %v83, 0
    %v176 = vsel %vm165, %v84, 0
    %v179 = vsel %vm165, %v85, 0
    %v182 = vsel %vm165, %v86, 0
    %v185 = vsel %vm165, %v87, 0
    %v188 = vsel %vm165, %v88, 0
    %v191 = vsel %vm165, %v89, 0
    %v194 = vsel %vm165, %v90, 0
    %v197 = vsel %vm165, %v91, 0
    %v200 = vsel %vm165, %v92, 0
    %v203 = vsel %vm165, %v93, 0
    %v206 = vsel %vm165, %v94, 0
    %v209 = vsel %vm165, %v95, 0
    %v212 = vsel %vm165, %v96, 0
    %v215 = vsel %vm165, %v97, 0
    %v218 = vsel %vm165, %v98, 0
    %v221 = vsel %vm165, %v99, 0
    %v224 = vsel %vm165, %v100, 0
    %v227 = vsel %vm165, %v101, 0
    %v230 = vsel %vm165, %v102, 0
    %v233 = vsel %vm165, %v103, 0
    %v236 = vsel %vm165, %v104, 0
    %v239 = vsel %vm165, %v105, 0
    %v242 = vsel %vm165, %v106, 0
    %v245 = vsel %vm165, %v107, 0
    %v248 = vsel %vm165, %v108, 0
    %v251 = vsel %vm165, %v109, 0
    %v254 = vsel %vm165, %v110, 0
    %v257 = vsel %vm165, %v111, 0
    %v260 = vsel %vm165, %v112, 0
    %v263 = vsel %vm165, %v117, 0
    %v266 = vsel %vm165, %v118, 0
    %v269 = vsel %vm165, %v119, 0
    %v272 = vsel %vm165, %v120, 0
    %v275 = vsel %vm165, %v121, 0
    %v278 = vsel %vm165, %v122, 0
    %v281 = vsel %vm165, %v123, 0
    %v284 = vsel %vm165, %v124, 0
    %v287 = vsel %vm165, %v125, 0
    %v290 = vsel %vm165, %v126, 0
    %v293 = vsel %vm165, %v127, 0
    %v296 = vsel %vm165, %v128, 0
    %v299 = vsel %vm165, %v129, 0
    %v302 = vsel %vm165, %v130, 0
    %v305 = vsel %vm165, %v131, 0
    %v308 = vsel %vm165, %v132, 0
    %v311 = vsel %vm165, %v133, 0
    %v314 = vsel %vm165, %v134, 0
    %v317 = vsel %vm165, %v135, 0
    %v320 = vsel %vm165, %v136, 0
    %v323 = vsel %vm165, %v137, 0
    %v326 = vsel %vm165, %v138, 0
    %v329 = vsel %vm165, %v139, 0
    %v332 = vsel %vm165, %v140, 0
    %v335 = vsel %vm165, %v141, 0
    %v338 = vsel %vm165, %v142, 0
    %v341 = vsel %vm165, %v143, 0
    %v344 = vsel %vm165, %v144, 0
    %v347 = vsel %vm165, %v145, 0
    %v350 = vsel %vm165, %v146, 0
    %v353 = vsel %vm165, %v147, 0
    %v356 = vsel %vm165, %v148, 0
    %v359 = vsel %vm165, %v149, 0
    %v362 = vsel %vm165, %v150, 0
    %v365 = vsel %vm165, %v151, 0
    %v368 = vsel %vm165, %v152, 0
    %v371 = vsel %vm165, %v153, 0
    %v374 = vsel %vm165, %v154, 0
    %v377 = vsel %vm165, %v155, 0
    %v380 = vsel %vm165, %v156, 0
    %v383 = vsel %vm165, %v157, 0
    %v386 = vsel %vm165, %v158, 0
    %v389 = vsel %vm165, %v159, 0
    %v392 = vsel %vm165, %v160, 0
    %v395 = vsel %vm165, %v161, 0
    %v398 = vsel %vm165, %v162, 0
    %v401 = vsel %vm165, %v163, 0
    %v404 = vsel %vm165, %v164, 0
    %406 = vmatpush.msra.mxu0 0.0
    %407 = vmatpush.msra.mxu0 0.0
    %408 = vmatpush.msra.mxu0 0.0
    %409 = vmatpush.msra.mxu0 0.0
    %410 = vmatpush.msra.mxu0 0.0
    %411 = vmatpush.msra.mxu0 0.0
    %412 = vmatpush.msra.mxu0 0.0
    %413 = vmatpush.msra.mxu0 0.0
    %414 = vmatpush.msra.mxu0 0.0
    %415 = vmatpush.msra.mxu0 0.0
    %416 = vmatpush.msra.mxu0 0.0
    %417 = vmatpush.msra.mxu0 0.0
    %418 = vmatpush.msra.mxu0 0.0
    %419 = vmatpush.msra.mxu0 0.0
    %420 = vmatpush.msra.mxu0 %v114
    %421 = vmatpush.msra.mxu0 %v113
    %422 = vmatmul.f32.gmra.mxu0 %v167
    %v423 = vpop.f32.mrf.mxu0
    %v424 = vadd.f32 0.0, %v423
    %425 = vmatmul.f32.gmra.mxu0 %v170
    %v426 = vpop.f32.mrf.mxu0
    %v427 = vadd.f32 0.0, %v426
    %428 = vmatmul.f32.gmra.mxu0 %v173
    %v429 = vpop.f32.mrf.mxu0
    %v430 = vadd.f32 0.0, %v429
    %431 = vmatmul.f32.gmra.mxu0 %v176
    %v432 = vpop.f32.mrf.mxu0
    %v433 = vadd.f32 0.0, %v432
    %434 = vmatmul.f32.gmra.mxu0 %v179
    %v435 = vpop.f32.mrf.mxu0
    %v436 = vadd.f32 0.0, %v435
    %437 = vmatmul.f32.gmra.mxu0 %v182
    %v438 = vpop.f32.mrf.mxu0
    %v439 = vadd.f32 0.0, %v438
    %440 = vmatmul.f32.gmra.mxu0 %v185
    %v441 = vpop.f32.mrf.mxu0
    %v442 = vadd.f32 0.0, %v441
    %443 = vmatmul.f32.gmra.mxu0 %v188
    %v444 = vpop.f32.mrf.mxu0
    %v445 = vadd.f32 0.0, %v444
    %446 = vmatmul.f32.gmra.mxu0 %v191
    %v447 = vpop.f32.mrf.mxu0
    %v448 = vadd.f32 0.0, %v447
    %449 = vmatmul.f32.gmra.mxu0 %v194
    %v450 = vpop.f32.mrf.mxu0
    %v451 = vadd.f32 0.0, %v450
    %452 = vmatmul.f32.gmra.mxu0 %v197
    %v453 = vpop.f32.mrf.mxu0
    %v454 = vadd.f32 0.0, %v453
    %455 = vmatmul.f32.gmra.mxu0 %v200
    %v456 = vpop.f32.mrf.mxu0
    %v457 = vadd.f32 0.0, %v456
    %458 = vmatmul.f32.gmra.mxu0 %v203
    %v459 = vpop.f32.mrf.mxu0
    %v460 = vadd.f32 0.0, %v459
    %461 = vmatmul.f32.gmra.mxu0 %v206
    %v462 = vpop.f32.mrf.mxu0
    %v463 = vadd.f32 0.0, %v462
    %464 = vmatmul.f32.gmra.mxu0 %v209
    %v465 = vpop.f32.mrf.mxu0
    %v466 = vadd.f32 0.0, %v465
    %467 = vmatmul.f32.gmra.mxu0 %v212
    %v468 = vpop.f32.mrf.mxu0
    %v469 = vadd.f32 0.0, %v468
    %470 = vmatmul.f32.gmra.mxu0 %v215
    %v471 = vpop.f32.mrf.mxu0
    %v472 = vadd.f32 0.0, %v471
    %473 = vmatmul.f32.gmra.mxu0 %v218
    %v474 = vpop.f32.mrf.mxu0
    %v475 = vadd.f32 0.0, %v474
    %476 = vmatmul.f32.gmra.mxu0 %v221
    %v477 = vpop.f32.mrf.mxu0
    %v478 = vadd.f32 0.0, %v477
    %479 = vmatmul.f32.gmra.mxu0 %v224
    %v480 = vpop.f32.mrf.mxu0
    %v481 = vadd.f32 0.0, %v480
    %482 = vmatmul.f32.gmra.mxu0 %v227
    %v483 = vpop.f32.mrf.mxu0
    %v484 = vadd.f32 0.0, %v483
    %485 = vmatmul.f32.gmra.mxu0 %v230
    %v486 = vpop.f32.mrf.mxu0
    %v487 = vadd.f32 0.0, %v486
    %488 = vmatmul.f32.gmra.mxu0 %v233
    %v489 = vpop.f32.mrf.mxu0
    %v490 = vadd.f32 0.0, %v489
    %491 = vmatmul.f32.gmra.mxu0 %v236
    %v492 = vpop.f32.mrf.mxu0
    %v493 = vadd.f32 0.0, %v492
    %494 = vmatmul.f32.gmra.mxu0 %v239
    %v495 = vpop.f32.mrf.mxu0
    %v496 = vadd.f32 0.0, %v495
    %497 = vmatmul.f32.gmra.mxu0 %v242
    %v498 = vpop.f32.mrf.mxu0
    %v499 = vadd.f32 0.0, %v498
    %500 = vmatmul.f32.gmra.mxu0 %v245
    %v501 = vpop.f32.mrf.mxu0
    %v502 = vadd.f32 0.0, %v501
    %503 = vmatmul.f32.gmra.mxu0 %v248
    %v504 = vpop.f32.mrf.mxu0
    %v505 = vadd.f32 0.0, %v504
    %506 = vmatmul.f32.gmra.mxu0 %v251
    %v507 = vpop.f32.mrf.mxu0
    %v508 = vadd.f32 0.0, %v507
    %509 = vmatmul.f32.gmra.mxu0 %v254
    %v510 = vpop.f32.mrf.mxu0
    %v511 = vadd.f32 0.0, %v510
    %512 = vmatmul.f32.gmra.mxu0 %v257
    %v513 = vpop.f32.mrf.mxu0
    %v514 = vadd.f32 0.0, %v513
    %515 = vmatmul.f32.gmra.mxu0 %v260
    %v516 = vpop.f32.mrf.mxu0
    %v517 = vadd.f32 0.0, %v516
    %518 = vmatmul.f32.gmra.mxu0 %v263
    %v519 = vpop.f32.mrf.mxu0
    %v520 = vadd.f32 0.0, %v519
    %521 = vmatmul.f32.gmra.mxu0 %v266
    %v522 = vpop.f32.mrf.mxu0
    %v523 = vadd.f32 0.0, %v522
    %524 = vmatmul.f32.gmra.mxu0 %v269
    %v525 = vpop.f32.mrf.mxu0
    %v526 = vadd.f32 0.0, %v525
    %527 = vmatmul.f32.gmra.mxu0 %v272
    %v528 = vpop.f32.mrf.mxu0
    %v529 = vadd.f32 0.0, %v528
    %530 = vmatmul.f32.gmra.mxu0 %v275
    %v531 = vpop.f32.mrf.mxu0
    %v532 = vadd.f32 0.0, %v531
    %533 = vmatmul.f32.gmra.mxu0 %v278
    %v534 = vpop.f32.mrf.mxu0
    %v535 = vadd.f32 0.0, %v534
    %536 = vmatmul.f32.gmra.mxu0 %v281
    %v537 = vpop.f32.mrf.mxu0
    %v538 = vadd.f32 0.0, %v537
    %539 = vmatmul.f32.gmra.mxu0 %v284
    %v540 = vpop.f32.mrf.mxu0
    %v541 = vadd.f32 0.0, %v540
    %542 = vmatmul.f32.gmra.mxu0 %v287
    %v543 = vpop.f32.mrf.mxu0
    %v544 = vadd.f32 0.0, %v543
    %545 = vmatmul.f32.gmra.mxu0 %v290
    %v546 = vpop.f32.mrf.mxu0
    %v547 = vadd.f32 0.0, %v546
    %548 = vmatmul.f32.gmra.mxu0 %v293
    %v549 = vpop.f32.mrf.mxu0
    %v550 = vadd.f32 0.0, %v549
    %551 = vmatmul.f32.gmra.mxu0 %v296
    %v552 = vpop.f32.mrf.mxu0
    %v553 = vadd.f32 0.0, %v552
    %554 = vmatmul.f32.gmra.mxu0 %v299
    %v555 = vpop.f32.mrf.mxu0
    %v556 = vadd.f32 0.0, %v555
    %557 = vmatmul.f32.gmra.mxu0 %v302
    %v558 = vpop.f32.mrf.mxu0
    %v559 = vadd.f32 0.0, %v558
    %560 = vmatmul.f32.gmra.mxu0 %v305
    %v561 = vpop.f32.mrf.mxu0
    %v562 = vadd.f32 0.0, %v561
    %563 = vmatmul.f32.gmra.mxu0 %v308
    %v564 = vpop.f32.mrf.mxu0
    %v565 = vadd.f32 0.0, %v564
    %566 = vmatmul.f32.gmra.mxu0 %v311
    %v567 = vpop.f32.mrf.mxu0
    %v568 = vadd.f32 0.0, %v567
    %569 = vmatmul.f32.gmra.mxu0 %v314
    %v570 = vpop.f32.mrf.mxu0
    %v571 = vadd.f32 0.0, %v570
    %572 = vmatmul.f32.gmra.mxu0 %v317
    %v573 = vpop.f32.mrf.mxu0
    %v574 = vadd.f32 0.0, %v573
    %575 = vmatmul.f32.gmra.mxu0 %v320
    %v576 = vpop.f32.mrf.mxu0
    %v577 = vadd.f32 0.0, %v576
    %578 = vmatmul.f32.gmra.mxu0 %v323
    %v579 = vpop.f32.mrf.mxu0
    %v580 = vadd.f32 0.0, %v579
    %581 = vmatmul.f32.gmra.mxu0 %v326
    %v582 = vpop.f32.mrf.mxu0
    %v583 = vadd.f32 0.0, %v582
    %584 = vmatmul.f32.gmra.mxu0 %v329
    %v585 = vpop.f32.mrf.mxu0
    %v586 = vadd.f32 0.0, %v585
    %587 = vmatmul.f32.gmra.mxu0 %v332
    %v588 = vpop.f32.mrf.mxu0
    %v589 = vadd.f32 0.0, %v588
    %590 = vmatmul.f32.gmra.mxu0 %v335
    %v591 = vpop.f32.mrf.mxu0
    %v592 = vadd.f32 0.0, %v591
    %593 = vmatmul.f32.gmra.mxu0 %v338
    %v594 = vpop.f32.mrf.mxu0
    %v595 = vadd.f32 0.0, %v594
    %596 = vmatmul.f32.gmra.mxu0 %v341
    %v597 = vpop.f32.mrf.mxu0
    %v598 = vadd.f32 0.0, %v597
    %599 = vmatmul.f32.gmra.mxu0 %v344
    %v600 = vpop.f32.mrf.mxu0
    %v601 = vadd.f32 0.0, %v600
    %602 = vmatmul.f32.gmra.mxu0 %v347
    %v603 = vpop.f32.mrf.mxu0
    %v604 = vadd.f32 0.0, %v603
    %605 = vmatmul.f32.gmra.mxu0 %v350
    %v606 = vpop.f32.mrf.mxu0
    %v607 = vadd.f32 0.0, %v606
    %608 = vmatmul.f32.gmra.mxu0 %v353
    %v609 = vpop.f32.mrf.mxu0
    %v610 = vadd.f32 0.0, %v609
    %611 = vmatmul.f32.gmra.mxu0 %v356
    %v612 = vpop.f32.mrf.mxu0
    %v613 = vadd.f32 0.0, %v612
    %614 = vmatmul.f32.gmra.mxu0 %v359
    %v615 = vpop.f32.mrf.mxu0
    %v616 = vadd.f32 0.0, %v615
    %617 = vmatmul.f32.gmra.mxu0 %v362
    %v618 = vpop.f32.mrf.mxu0
    %v619 = vadd.f32 0.0, %v618
    %620 = vmatmul.f32.gmra.mxu0 %v365
    %v621 = vpop.f32.mrf.mxu0
    %v622 = vadd.f32 0.0, %v621
    %623 = vmatmul.f32.gmra.mxu0 %v368
    %v624 = vpop.f32.mrf.mxu0
    %v625 = vadd.f32 0.0, %v624
    %626 = vmatmul.f32.gmra.mxu0 %v371
    %v627 = vpop.f32.mrf.mxu0
    %v628 = vadd.f32 0.0, %v627
    %629 = vmatmul.f32.gmra.mxu0 %v374
    %v630 = vpop.f32.mrf.mxu0
    %v631 = vadd.f32 0.0, %v630
    %632 = vmatmul.f32.gmra.mxu0 %v377
    %v633 = vpop.f32.mrf.mxu0
    %v634 = vadd.f32 0.0, %v633
    %635 = vmatmul.f32.gmra.mxu0 %v380
    %v636 = vpop.f32.mrf.mxu0
    %v637 = vadd.f32 0.0, %v636
    %638 = vmatmul.f32.gmra.mxu0 %v383
    %v639 = vpop.f32.mrf.mxu0
    %v640 = vadd.f32 0.0, %v639
    %641 = vmatmul.f32.gmra.mxu0 %v386
    %v642 = vpop.f32.mrf.mxu0
    %v643 = vadd.f32 0.0, %v642
    %644 = vmatmul.f32.gmra.mxu0 %v389
    %v645 = vpop.f32.mrf.mxu0
    %v646 = vadd.f32 0.0, %v645
    %647 = vmatmul.f32.gmra.mxu0 %v392
    %v648 = vpop.f32.mrf.mxu0
    %v649 = vadd.f32 0.0, %v648
    %650 = vmatmul.f32.gmra.mxu0 %v395
    %v651 = vpop.f32.mrf.mxu0
    %v652 = vadd.f32 0.0, %v651
    %653 = vmatmul.f32.gmra.mxu0 %v398
    %v654 = vpop.f32.mrf.mxu0
    %v655 = vadd.f32 0.0, %v654
    %656 = vmatmul.f32.gmra.mxu0 %v401
    %v657 = vpop.f32.mrf.mxu0
    %v658 = vadd.f32 0.0, %v657
    %659 = vmatmul.f32.gmra.mxu0 %v404
    %v660 = vpop.f32.mrf.mxu0
    %v661 = vadd.f32 0.0, %v660
    %662 = vdwg.mxu0
    %v664 = vsel %vm165, %v115, 0
    %v667 = vsel %vm165, %v116, 0
    %669 = vmatpush.msra.mxu0 0.0
    %670 = vmatpush.msra.mxu0 0.0
    %671 = vmatpush.msra.mxu0 0.0
    %672 = vmatpush.msra.mxu0 0.0
    %673 = vmatpush.msra.mxu0 0.0
    %674 = vmatpush.msra.mxu0 0.0
    %675 = vmatpush.msra.mxu0 0.0
    %676 = vmatpush.msra.mxu0 0.0
    %677 = vmatpush.msra.mxu0 0.0
    %678 = vmatpush.msra.mxu0 0.0
    %679 = vmatpush.msra.mxu0 0.0
    %680 = vmatpush.msra.mxu0 0.0
    %681 = vmatpush.msra.mxu0 0.0
    %682 = vmatpush.msra.mxu0 0.0
    %683 = vmatpush.msra.mxu0 %v427
    %684 = vmatpush.msra.mxu0 %v424
    %685 = vmatmul.f32.gmra.mxu0 %v664
    %v686 = vpop.f32.mrf.mxu0
    %v687 = vadd.f32 0.0, %v686
    %688 = vmatmul.f32.gmra.mxu0 %v667
    %v689 = vpop.f32.mrf.mxu0
    %v690 = vadd.f32 0.0, %v689
    %691 = vdwg.mxu0
    %692 = vmatpush.msra.mxu0 0.0
    %693 = vmatpush.msra.mxu0 0.0
    %694 = vmatpush.msra.mxu0 0.0
    %695 = vmatpush.msra.mxu0 0.0
    %696 = vmatpush.msra.mxu0 0.0
    %697 = vmatpush.msra.mxu0 0.0
    %698 = vmatpush.msra.mxu0 0.0
    %699 = vmatpush.msra.mxu0 0.0
    %700 = vmatpush.msra.mxu0 0.0
    %701 = vmatpush.msra.mxu0 0.0
    %702 = vmatpush.msra.mxu0 0.0
    %703 = vmatpush.msra.mxu0 0.0
    %704 = vmatpush.msra.mxu0 0.0
    %705 = vmatpush.msra.mxu0 0.0
    %706 = vmatpush.msra.mxu0 %v433
    %707 = vmatpush.msra.mxu0 %v430
    %708 = vmatmul.f32.gmra.mxu0 %v664
    %v709 = vpop.f32.mrf.mxu0
    %v710 = vadd.f32 0.0, %v709
    %711 = vmatmul.f32.gmra.mxu0 %v667
    %v712 = vpop.f32.mrf.mxu0
    %v713 = vadd.f32 0.0, %v712
    %714 = vdwg.mxu0
    %715 = vmatpush.msra.mxu0 0.0
    %716 = vmatpush.msra.mxu0 0.0
    %717 = vmatpush.msra.mxu0 0.0
    %718 = vmatpush.msra.mxu0 0.0
    %719 = vmatpush.msra.mxu0 0.0
    %720 = vmatpush.msra.mxu0 0.0
    %721 = vmatpush.msra.mxu0 0.0
    %722 = vmatpush.msra.mxu0 0.0
    %723 = vmatpush.msra.mxu0 0.0
    %724 = vmatpush.msra.mxu0 0.0
    %725 = vmatpush.msra.mxu0 0.0
    %726 = vmatpush.msra.mxu0 0.0
    %727 = vmatpush.msra.mxu0 0.0
    %728 = vmatpush.msra.mxu0 0.0
    %729 = vmatpush.msra.mxu0 %v439
    %730 = vmatpush.msra.mxu0 %v436
    %731 = vmatmul.f32.gmra.mxu0 %v664
    %v732 = vpop.f32.mrf.mxu0
    %v733 = vadd.f32 0.0, %v732
    %734 = vmatmul.f32.gmra.mxu0 %v667
    %v735 = vpop.f32.mrf.mxu0
    %v736 = vadd.f32 0.0, %v735
    %737 = vdwg.mxu0
    %738 = vmatpush.msra.mxu0 0.0
    %739 = vmatpush.msra.mxu0 0.0
    %740 = vmatpush.msra.mxu0 0.0
    %741 = vmatpush.msra.mxu0 0.0
    %742 = vmatpush.msra.mxu0 0.0
    %743 = vmatpush.msra.mxu0 0.0
    %744 = vmatpush.msra.mxu0 0.0
    %745 = vmatpush.msra.mxu0 0.0
    %746 = vmatpush.msra.mxu0 0.0
    %747 = vmatpush.msra.mxu0 0.0
    %748 = vmatpush.msra.mxu0 0.0
    %749 = vmatpush.msra.mxu0 0.0
    %750 = vmatpush.msra.mxu0 0.0
    %751 = vmatpush.msra.mxu0 0.0
    %752 = vmatpush.msra.mxu0 %v445
    %753 = vmatpush.msra.mxu0 %v442
    %754 = vmatmul.f32.gmra.mxu0 %v664
    %v755 = vpop.f32.mrf.mxu0
    %v756 = vadd.f32 0.0, %v755
    %757 = vmatmul.f32.gmra.mxu0 %v667
    %v758 = vpop.f32.mrf.mxu0
    %v759 = vadd.f32 0.0, %v758
    %760 = vdwg.mxu0
    %761 = vmatpush.msra.mxu0 0.0
    %762 = vmatpush.msra.mxu0 0.0
    %763 = vmatpush.msra.mxu0 0.0
    %764 = vmatpush.msra.mxu0 0.0
    %765 = vmatpush.msra.mxu0 0.0
    %766 = vmatpush.msra.mxu0 0.0
    %767 = vmatpush.msra.mxu0 0.0
    %768 = vmatpush.msra.mxu0 0.0
    %769 = vmatpush.msra.mxu0 0.0
    %770 = vmatpush.msra.mxu0 0.0
    %771 = vmatpush.msra.mxu0 0.0
    %772 = vmatpush.msra.mxu0 0.0
    %773 = vmatpush.msra.mxu0 0.0
    %774 = vmatpush.msra.mxu0 0.0
    %775 = vmatpush.msra.mxu0 %v451
    %776 = vmatpush.msra.mxu0 %v448
    %777 = vmatmul.f32.gmra.mxu0 %v664
    %v778 = vpop.f32.mrf.mxu0
    %v779 = vadd.f32 0.0, %v778
    %780 = vmatmul.f32.gmra.mxu0 %v667
    %v781 = vpop.f32.mrf.mxu0
    %v782 = vadd.f32 0.0, %v781
    %783 = vdwg.mxu0
    %784 = vmatpush.msra.mxu0 0.0
    %785 = vmatpush.msra.mxu0 0.0
    %786 = vmatpush.msra.mxu0 0.0
    %787 = vmatpush.msra.mxu0 0.0
    %788 = vmatpush.msra.mxu0 0.0
    %789 = vmatpush.msra.mxu0 0.0
    %790 = vmatpush.msra.mxu0 0.0
    %791 = vmatpush.msra.mxu0 0.0
    %792 = vmatpush.msra.mxu0 0.0
    %793 = vmatpush.msra.mxu0 0.0
    %794 = vmatpush.msra.mxu0 0.0
    %795 = vmatpush.msra.mxu0 0.0
    %796 = vmatpush.msra.mxu0 0.0
    %797 = vmatpush.msra.mxu0 0.0
    %798 = vmatpush.msra.mxu0 %v457
    %799 = vmatpush.msra.mxu0 %v454
    %800 = vmatmul.f32.gmra.mxu0 %v664
    %v801 = vpop.f32.mrf.mxu0
    %v802 = vadd.f32 0.0, %v801
    %803 = vmatmul.f32.gmra.mxu0 %v667
    %v804 = vpop.f32.mrf.mxu0
    %v805 = vadd.f32 0.0, %v804
    %806 = vdwg.mxu0
    %807 = vmatpush.msra.mxu0 0.0
    %808 = vmatpush.msra.mxu0 0.0
    %809 = vmatpush.msra.mxu0 0.0
    %810 = vmatpush.msra.mxu0 0.0
    %811 = vmatpush.msra.mxu0 0.0
    %812 = vmatpush.msra.mxu0 0.0
    %813 = vmatpush.msra.mxu0 0.0
    %814 = vmatpush.msra.mxu0 0.0
    %815 = vmatpush.msra.mxu0 0.0
    %816 = vmatpush.msra.mxu0 0.0
    %817 = vmatpush.msra.mxu0 0.0
    %818 = vmatpush.msra.mxu0 0.0
    %819 = vmatpush.msra.mxu0 0.0
    %820 = vmatpush.msra.mxu0 0.0
    %821 = vmatpush.msra.mxu0 %v463
    %822 = vmatpush.msra.mxu0 %v460
    %823 = vmatmul.f32.gmra.mxu0 %v664
    %v824 = vpop.f32.mrf.mxu0
    %v825 = vadd.f32 0.0, %v824
    %826 = vmatmul.f32.gmra.mxu0 %v667
    %v827 = vpop.f32.mrf.mxu0
    %v828 = vadd.f32 0.0, %v827
    %829 = vdwg.mxu0
    %830 = vmatpush.msra.mxu0 0.0
    %831 = vmatpush.msra.mxu0 0.0
    %832 = vmatpush.msra.mxu0 0.0
    %833 = vmatpush.msra.mxu0 0.0
    %834 = vmatpush.msra.mxu0 0.0
    %835 = vmatpush.msra.mxu0 0.0
    %836 = vmatpush.msra.mxu0 0.0
    %837 = vmatpush.msra.mxu0 0.0
    %838 = vmatpush.msra.mxu0 0.0
    %839 = vmatpush.msra.mxu0 0.0
    %840 = vmatpush.msra.mxu0 0.0
    %841 = vmatpush.msra.mxu0 0.0
    %842 = vmatpush.msra.mxu0 0.0
    %843 = vmatpush.msra.mxu0 0.0
    %844 = vmatpush.msra.mxu0 %v469
    %845 = vmatpush.msra.mxu0 %v466
    %846 = vmatmul.f32.gmra.mxu0 %v664
    %v847 = vpop.f32.mrf.mxu0
    %v848 = vadd.f32 0.0, %v847
    %849 = vmatmul.f32.gmra.mxu0 %v667
    %v850 = vpop.f32.mrf.mxu0
    %v851 = vadd.f32 0.0, %v850
    %852 = vdwg.mxu0
    %853 = vmatpush.msra.mxu0 0.0
    %854 = vmatpush.msra.mxu0 0.0
    %855 = vmatpush.msra.mxu0 0.0
    %856 = vmatpush.msra.mxu0 0.0
    %857 = vmatpush.msra.mxu0 0.0
    %858 = vmatpush.msra.mxu0 0.0
    %859 = vmatpush.msra.mxu0 0.0
    %860 = vmatpush.msra.mxu0 0.0
    %861 = vmatpush.msra.mxu0 0.0
    %862 = vmatpush.msra.mxu0 0.0
    %863 = vmatpush.msra.mxu0 0.0
    %864 = vmatpush.msra.mxu0 0.0
    %865 = vmatpush.msra.mxu0 0.0
    %866 = vmatpush.msra.mxu0 0.0
    %867 = vmatpush.msra.mxu0 %v475
    %868 = vmatpush.msra.mxu0 %v472
    %869 = vmatmul.f32.gmra.mxu0 %v664
    %v870 = vpop.f32.mrf.mxu0
    %v871 = vadd.f32 0.0, %v870
    %872 = vmatmul.f32.gmra.mxu0 %v667
    %v873 = vpop.f32.mrf.mxu0
    %v874 = vadd.f32 0.0, %v873
    %875 = vdwg.mxu0
    %876 = vmatpush.msra.mxu0 0.0
    %877 = vmatpush.msra.mxu0 0.0
    %878 = vmatpush.msra.mxu0 0.0
    %879 = vmatpush.msra.mxu0 0.0
    %880 = vmatpush.msra.mxu0 0.0
    %881 = vmatpush.msra.mxu0 0.0
    %882 = vmatpush.msra.mxu0 0.0
    %883 = vmatpush.msra.mxu0 0.0
    %884 = vmatpush.msra.mxu0 0.0
    %885 = vmatpush.msra.mxu0 0.0
    %886 = vmatpush.msra.mxu0 0.0
    %887 = vmatpush.msra.mxu0 0.0
    %888 = vmatpush.msra.mxu0 0.0
    %889 = vmatpush.msra.mxu0 0.0
    %890 = vmatpush.msra.mxu0 %v481
    %891 = vmatpush.msra.mxu0 %v478
    %892 = vmatmul.f32.gmra.mxu0 %v664
    %v893 = vpop.f32.mrf.mxu0
    %v894 = vadd.f32 0.0, %v893
    %895 = vmatmul.f32.gmra.mxu0 %v667
    %v896 = vpop.f32.mrf.mxu0
    %v897 = vadd.f32 0.0, %v896
    %898 = vdwg.mxu0
    %899 = vmatpush.msra.mxu0 0.0
    %900 = vmatpush.msra.mxu0 0.0
    %901 = vmatpush.msra.mxu0 0.0
    %902 = vmatpush.msra.mxu0 0.0
    %903 = vmatpush.msra.mxu0 0.0
    %904 = vmatpush.msra.mxu0 0.0
    %905 = vmatpush.msra.mxu0 0.0
    %906 = vmatpush.msra.mxu0 0.0
    %907 = vmatpush.msra.mxu0 0.0
    %908 = vmatpush.msra.mxu0 0.0
    %909 = vmatpush.msra.mxu0 0.0
    %910 = vmatpush.msra.mxu0 0.0
    %911 = vmatpush.msra.mxu0 0.0
    %912 = vmatpush.msra.mxu0 0.0
    %913 = vmatpush.msra.mxu0 %v487
    %914 = vmatpush.msra.mxu0 %v484
    %915 = vmatmul.f32.gmra.mxu0 %v664
    %v916 = vpop.f32.mrf.mxu0
    %v917 = vadd.f32 0.0, %v916
    %918 = vmatmul.f32.gmra.mxu0 %v667
    %v919 = vpop.f32.mrf.mxu0
    %v920 = vadd.f32 0.0, %v919
    %921 = vdwg.mxu0
    %922 = vmatpush.msra.mxu0 0.0
    %923 = vmatpush.msra.mxu0 0.0
    %924 = vmatpush.msra.mxu0 0.0
    %925 = vmatpush.msra.mxu0 0.0
    %926 = vmatpush.msra.mxu0 0.0
    %927 = vmatpush.msra.mxu0 0.0
    %928 = vmatpush.msra.mxu0 0.0
    %929 = vmatpush.msra.mxu0 0.0
    %930 = vmatpush.msra.mxu0 0.0
    %931 = vmatpush.msra.mxu0 0.0
    %932 = vmatpush.msra.mxu0 0.0
    %933 = vmatpush.msra.mxu0 0.0
    %934 = vmatpush.msra.mxu0 0.0
    %935 = vmatpush.msra.mxu0 0.0
    %936 = vmatpush.msra.mxu0 %v493
    %937 = vmatpush.msra.mxu0 %v490
    %938 = vmatmul.f32.gmra.mxu0 %v664
    %v939 = vpop.f32.mrf.mxu0
    %v940 = vadd.f32 0.0, %v939
    %941 = vmatmul.f32.gmra.mxu0 %v667
    %v942 = vpop.f32.mrf.mxu0
    %v943 = vadd.f32 0.0, %v942
    %944 = vdwg.mxu0
    %945 = vmatpush.msra.mxu0 0.0
    %946 = vmatpush.msra.mxu0 0.0
    %947 = vmatpush.msra.mxu0 0.0
    %948 = vmatpush.msra.mxu0 0.0
    %949 = vmatpush.msra.mxu0 0.0
    %950 = vmatpush.msra.mxu0 0.0
    %951 = vmatpush.msra.mxu0 0.0
    %952 = vmatpush.msra.mxu0 0.0
    %953 = vmatpush.msra.mxu0 0.0
    %954 = vmatpush.msra.mxu0 0.0
    %955 = vmatpush.msra.mxu0 0.0
    %956 = vmatpush.msra.mxu0 0.0
    %957 = vmatpush.msra.mxu0 0.0
    %958 = vmatpush.msra.mxu0 0.0
    %959 = vmatpush.msra.mxu0 %v499
    %960 = vmatpush.msra.mxu0 %v496
    %961 = vmatmul.f32.gmra.mxu0 %v664
    %v962 = vpop.f32.mrf.mxu0
    %v963 = vadd.f32 0.0, %v962
    %964 = vmatmul.f32.gmra.mxu0 %v667
    %v965 = vpop.f32.mrf.mxu0
    %v966 = vadd.f32 0.0, %v965
    %967 = vdwg.mxu0
    %968 = vmatpush.msra.mxu0 0.0
    %969 = vmatpush.msra.mxu0 0.0
    %970 = vmatpush.msra.mxu0 0.0
    %971 = vmatpush.msra.mxu0 0.0
    %972 = vmatpush.msra.mxu0 0.0
    %973 = vmatpush.msra.mxu0 0.0
    %974 = vmatpush.msra.mxu0 0.0
    %975 = vmatpush.msra.mxu0 0.0
    %976 = vmatpush.msra.mxu0 0.0
    %977 = vmatpush.msra.mxu0 0.0
    %978 = vmatpush.msra.mxu0 0.0
    %979 = vmatpush.msra.mxu0 0.0
    %980 = vmatpush.msra.mxu0 0.0
    %981 = vmatpush.msra.mxu0 0.0
    %982 = vmatpush.msra.mxu0 %v505
    %983 = vmatpush.msra.mxu0 %v502
    %984 = vmatmul.f32.gmra.mxu0 %v664
    %v985 = vpop.f32.mrf.mxu0
    %v986 = vadd.f32 0.0, %v985
    %987 = vmatmul.f32.gmra.mxu0 %v667
    %v988 = vpop.f32.mrf.mxu0
    %v989 = vadd.f32 0.0, %v988
    %990 = vdwg.mxu0
    %991 = vmatpush.msra.mxu0 0.0
    %992 = vmatpush.msra.mxu0 0.0
    %993 = vmatpush.msra.mxu0 0.0
    %994 = vmatpush.msra.mxu0 0.0
    %995 = vmatpush.msra.mxu0 0.0
    %996 = vmatpush.msra.mxu0 0.0
    %997 = vmatpush.msra.mxu0 0.0
    %998 = vmatpush.msra.mxu0 0.0
    %999 = vmatpush.msra.mxu0 0.0
    %1000 = vmatpush.msra.mxu0 0.0
    %1001 = vmatpush.msra.mxu0 0.0
    %1002 = vmatpush.msra.mxu0 0.0
    %1003 = vmatpush.msra.mxu0 0.0
    %1004 = vmatpush.msra.mxu0 0.0
    %1005 = vmatpush.msra.mxu0 %v511
    %1006 = vmatpush.msra.mxu0 %v508
    %1007 = vmatmul.f32.gmra.mxu0 %v664
    %v1008 = vpop.f32.mrf.mxu0
    %v1009 = vadd.f32 0.0, %v1008
    %1010 = vmatmul.f32.gmra.mxu0 %v667
    %v1011 = vpop.f32.mrf.mxu0
    %v1012 = vadd.f32 0.0, %v1011
    %1013 = vdwg.mxu0
    %1014 = vmatpush.msra.mxu0 0.0
    %1015 = vmatpush.msra.mxu0 0.0
    %1016 = vmatpush.msra.mxu0 0.0
    %1017 = vmatpush.msra.mxu0 0.0
    %1018 = vmatpush.msra.mxu0 0.0
    %1019 = vmatpush.msra.mxu0 0.0
    %1020 = vmatpush.msra.mxu0 0.0
    %1021 = vmatpush.msra.mxu0 0.0
    %1022 = vmatpush.msra.mxu0 0.0
    %1023 = vmatpush.msra.mxu0 0.0
    %1024 = vmatpush.msra.mxu0 0.0
    %1025 = vmatpush.msra.mxu0 0.0
    %1026 = vmatpush.msra.mxu0 0.0
    %1027 = vmatpush.msra.mxu0 0.0
    %1028 = vmatpush.msra.mxu0 %v517
    %1029 = vmatpush.msra.mxu0 %v514
    %1030 = vmatmul.f32.gmra.mxu0 %v664
    %v1031 = vpop.f32.mrf.mxu0
    %v1032 = vadd.f32 0.0, %v1031
    %1033 = vmatmul.f32.gmra.mxu0 %v667
    %v1034 = vpop.f32.mrf.mxu0
    %v1035 = vadd.f32 0.0, %v1034
    %1036 = vdwg.mxu0
    %1037 = vmatpush.msra.mxu0 0.0
    %1038 = vmatpush.msra.mxu0 0.0
    %1039 = vmatpush.msra.mxu0 0.0
    %1040 = vmatpush.msra.mxu0 0.0
    %1041 = vmatpush.msra.mxu0 0.0
    %1042 = vmatpush.msra.mxu0 0.0
    %1043 = vmatpush.msra.mxu0 0.0
    %1044 = vmatpush.msra.mxu0 0.0
    %1045 = vmatpush.msra.mxu0 0.0
    %1046 = vmatpush.msra.mxu0 0.0
    %1047 = vmatpush.msra.mxu0 0.0
    %1048 = vmatpush.msra.mxu0 0.0
    %1049 = vmatpush.msra.mxu0 0.0
    %1050 = vmatpush.msra.mxu0 0.0
    %1051 = vmatpush.msra.mxu0 %v523
    %1052 = vmatpush.msra.mxu0 %v520
    %1053 = vmatmul.f32.gmra.mxu0 %v664
    %v1054 = vpop.f32.mrf.mxu0
    %v1055 = vadd.f32 0.0, %v1054
    %1056 = vmatmul.f32.gmra.mxu0 %v667
    %v1057 = vpop.f32.mrf.mxu0
    %v1058 = vadd.f32 0.0, %v1057
    %1059 = vdwg.mxu0
    %1060 = vmatpush.msra.mxu0 0.0
    %1061 = vmatpush.msra.mxu0 0.0
    %1062 = vmatpush.msra.mxu0 0.0
    %1063 = vmatpush.msra.mxu0 0.0
    %1064 = vmatpush.msra.mxu0 0.0
    %1065 = vmatpush.msra.mxu0 0.0
    %1066 = vmatpush.msra.mxu0 0.0
    %1067 = vmatpush.msra.mxu0 0.0
    %1068 = vmatpush.msra.mxu0 0.0
    %1069 = vmatpush.msra.mxu0 0.0
    %1070 = vmatpush.msra.mxu0 0.0
    %1071 = vmatpush.msra.mxu0 0.0
    %1072 = vmatpush.msra.mxu0 0.0
    %1073 = vmatpush.msra.mxu0 0.0
    %1074 = vmatpush.msra.mxu0 %v529
    %1075 = vmatpush.msra.mxu0 %v526
    %1076 = vmatmul.f32.gmra.mxu0 %v664
    %v1077 = vpop.f32.mrf.mxu0
    %v1078 = vadd.f32 0.0, %v1077
    %1079 = vmatmul.f32.gmra.mxu0 %v667
    %v1080 = vpop.f32.mrf.mxu0
    %v1081 = vadd.f32 0.0, %v1080
    %1082 = vdwg.mxu0
    %1083 = vmatpush.msra.mxu0 0.0
    %1084 = vmatpush.msra.mxu0 0.0
    %1085 = vmatpush.msra.mxu0 0.0
    %1086 = vmatpush.msra.mxu0 0.0
    %1087 = vmatpush.msra.mxu0 0.0
    %1088 = vmatpush.msra.mxu0 0.0
    %1089 = vmatpush.msra.mxu0 0.0
    %1090 = vmatpush.msra.mxu0 0.0
    %1091 = vmatpush.msra.mxu0 0.0
    %1092 = vmatpush.msra.mxu0 0.0
    %1093 = vmatpush.msra.mxu0 0.0
    %1094 = vmatpush.msra.mxu0 0.0
    %1095 = vmatpush.msra.mxu0 0.0
    %1096 = vmatpush.msra.mxu0 0.0
    %1097 = vmatpush.msra.mxu0 %v535
    %1098 = vmatpush.msra.mxu0 %v532
    %1099 = vmatmul.f32.gmra.mxu0 %v664
    %v1100 = vpop.f32.mrf.mxu0
    %v1101 = vadd.f32 0.0, %v1100
    %1102 = vmatmul.f32.gmra.mxu0 %v667
    %v1103 = vpop.f32.mrf.mxu0
    %v1104 = vadd.f32 0.0, %v1103
    %1105 = vdwg.mxu0
    %1106 = vmatpush.msra.mxu0 0.0
    %1107 = vmatpush.msra.mxu0 0.0
    %1108 = vmatpush.msra.mxu0 0.0
    %1109 = vmatpush.msra.mxu0 0.0
    %1110 = vmatpush.msra.mxu0 0.0
    %1111 = vmatpush.msra.mxu0 0.0
    %1112 = vmatpush.msra.mxu0 0.0
    %1113 = vmatpush.msra.mxu0 0.0
    %1114 = vmatpush.msra.mxu0 0.0
    %1115 = vmatpush.msra.mxu0 0.0
    %1116 = vmatpush.msra.mxu0 0.0
    %1117 = vmatpush.msra.mxu0 0.0
    %1118 = vmatpush.msra.mxu0 0.0
    %1119 = vmatpush.msra.mxu0 0.0
    %1120 = vmatpush.msra.mxu0 %v541
    %1121 = vmatpush.msra.mxu0 %v538
    %1122 = vmatmul.f32.gmra.mxu0 %v664
    %v1123 = vpop.f32.mrf.mxu0
    %v1124 = vadd.f32 0.0, %v1123
    %1125 = vmatmul.f32.gmra.mxu0 %v667
    %v1126 = vpop.f32.mrf.mxu0
    %v1127 = vadd.f32 0.0, %v1126
    %1128 = vdwg.mxu0
    %1129 = vmatpush.msra.mxu0 0.0
    %1130 = vmatpush.msra.mxu0 0.0
    %1131 = vmatpush.msra.mxu0 0.0
    %1132 = vmatpush.msra.mxu0 0.0
    %1133 = vmatpush.msra.mxu0 0.0
    %1134 = vmatpush.msra.mxu0 0.0
    %1135 = vmatpush.msra.mxu0 0.0
    %1136 = vmatpush.msra.mxu0 0.0
    %1137 = vmatpush.msra.mxu0 0.0
    %1138 = vmatpush.msra.mxu0 0.0
    %1139 = vmatpush.msra.mxu0 0.0
    %1140 = vmatpush.msra.mxu0 0.0
    %1141 = vmatpush.msra.mxu0 0.0
    %1142 = vmatpush.msra.mxu0 0.0
    %1143 = vmatpush.msra.mxu0 %v547
    %1144 = vmatpush.msra.mxu0 %v544
    %1145 = vmatmul.f32.gmra.mxu0 %v664
    %v1146 = vpop.f32.mrf.mxu0
    %v1147 = vadd.f32 0.0, %v1146
    %1148 = vmatmul.f32.gmra.mxu0 %v667
    %v1149 = vpop.f32.mrf.mxu0
    %v1150 = vadd.f32 0.0, %v1149
    %1151 = vdwg.mxu0
    %1152 = vmatpush.msra.mxu0 0.0
    %1153 = vmatpush.msra.mxu0 0.0
    %1154 = vmatpush.msra.mxu0 0.0
    %1155 = vmatpush.msra.mxu0 0.0
    %1156 = vmatpush.msra.mxu0 0.0
    %1157 = vmatpush.msra.mxu0 0.0
    %1158 = vmatpush.msra.mxu0 0.0
    %1159 = vmatpush.msra.mxu0 0.0
    %1160 = vmatpush.msra.mxu0 0.0
    %1161 = vmatpush.msra.mxu0 0.0
    %1162 = vmatpush.msra.mxu0 0.0
    %1163 = vmatpush.msra.mxu0 0.0
    %1164 = vmatpush.msra.mxu0 0.0
    %1165 = vmatpush.msra.mxu0 0.0
    %1166 = vmatpush.msra.mxu0 %v553
    %1167 = vmatpush.msra.mxu0 %v550
    %1168 = vmatmul.f32.gmra.mxu0 %v664
    %v1169 = vpop.f32.mrf.mxu0
    %v1170 = vadd.f32 0.0, %v1169
    %1171 = vmatmul.f32.gmra.mxu0 %v667
    %v1172 = vpop.f32.mrf.mxu0
    %v1173 = vadd.f32 0.0, %v1172
    %1174 = vdwg.mxu0
    %1175 = vmatpush.msra.mxu0 0.0
    %1176 = vmatpush.msra.mxu0 0.0
    %1177 = vmatpush.msra.mxu0 0.0
    %1178 = vmatpush.msra.mxu0 0.0
    %1179 = vmatpush.msra.mxu0 0.0
    %1180 = vmatpush.msra.mxu0 0.0
    %1181 = vmatpush.msra.mxu0 0.0
    %1182 = vmatpush.msra.mxu0 0.0
    %1183 = vmatpush.msra.mxu0 0.0
    %1184 = vmatpush.msra.mxu0 0.0
    %1185 = vmatpush.msra.mxu0 0.0
    %1186 = vmatpush.msra.mxu0 0.0
    %1187 = vmatpush.msra.mxu0 0.0
    %1188 = vmatpush.msra.mxu0 0.0
    %1189 = vmatpush.msra.mxu0 %v559
    %1190 = vmatpush.msra.mxu0 %v556
    %1191 = vmatmul.f32.gmra.mxu0 %v664
    %v1192 = vpop.f32.mrf.mxu0
    %v1193 = vadd.f32 0.0, %v1192
    %1194 = vmatmul.f32.gmra.mxu0 %v667
    %v1195 = vpop.f32.mrf.mxu0
    %v1196 = vadd.f32 0.0, %v1195
    %1197 = vdwg.mxu0
    %1198 = vmatpush.msra.mxu0 0.0
    %1199 = vmatpush.msra.mxu0 0.0
    %1200 = vmatpush.msra.mxu0 0.0
    %1201 = vmatpush.msra.mxu0 0.0
    %1202 = vmatpush.msra.mxu0 0.0
    %1203 = vmatpush.msra.mxu0 0.0
    %1204 = vmatpush.msra.mxu0 0.0
    %1205 = vmatpush.msra.mxu0 0.0
    %1206 = vmatpush.msra.mxu0 0.0
    %1207 = vmatpush.msra.mxu0 0.0
    %1208 = vmatpush.msra.mxu0 0.0
    %1209 = vmatpush.msra.mxu0 0.0
    %1210 = vmatpush.msra.mxu0 0.0
    %1211 = vmatpush.msra.mxu0 0.0
    %1212 = vmatpush.msra.mxu0 %v565
    %1213 = vmatpush.msra.mxu0 %v562
    %1214 = vmatmul.f32.gmra.mxu0 %v664
    %v1215 = vpop.f32.mrf.mxu0
    %v1216 = vadd.f32 0.0, %v1215
    %1217 = vmatmul.f32.gmra.mxu0 %v667
    %v1218 = vpop.f32.mrf.mxu0
    %v1219 = vadd.f32 0.0, %v1218
    %1220 = vdwg.mxu0
    %1221 = vmatpush.msra.mxu0 0.0
    %1222 = vmatpush.msra.mxu0 0.0
    %1223 = vmatpush.msra.mxu0 0.0
    %1224 = vmatpush.msra.mxu0 0.0
    %1225 = vmatpush.msra.mxu0 0.0
    %1226 = vmatpush.msra.mxu0 0.0
    %1227 = vmatpush.msra.mxu0 0.0
    %1228 = vmatpush.msra.mxu0 0.0
    %1229 = vmatpush.msra.mxu0 0.0
    %1230 = vmatpush.msra.mxu0 0.0
    %1231 = vmatpush.msra.mxu0 0.0
    %1232 = vmatpush.msra.mxu0 0.0
    %1233 = vmatpush.msra.mxu0 0.0
    %1234 = vmatpush.msra.mxu0 0.0
    %1235 = vmatpush.msra.mxu0 %v571
    %1236 = vmatpush.msra.mxu0 %v568
    %1237 = vmatmul.f32.gmra.mxu0 %v664
    %v1238 = vpop.f32.mrf.mxu0
    %v1239 = vadd.f32 0.0, %v1238
    %1240 = vmatmul.f32.gmra.mxu0 %v667
    %v1241 = vpop.f32.mrf.mxu0
    %v1242 = vadd.f32 0.0, %v1241
    %1243 = vdwg.mxu0
    %1244 = vmatpush.msra.mxu0 0.0
    %1245 = vmatpush.msra.mxu0 0.0
    %1246 = vmatpush.msra.mxu0 0.0
    %1247 = vmatpush.msra.mxu0 0.0
    %1248 = vmatpush.msra.mxu0 0.0
    %1249 = vmatpush.msra.mxu0 0.0
    %1250 = vmatpush.msra.mxu0 0.0
    %1251 = vmatpush.msra.mxu0 0.0
    %1252 = vmatpush.msra.mxu0 0.0
    %1253 = vmatpush.msra.mxu0 0.0
    %1254 = vmatpush.msra.mxu0 0.0
    %1255 = vmatpush.msra.mxu0 0.0
    %1256 = vmatpush.msra.mxu0 0.0
    %1257 = vmatpush.msra.mxu0 0.0
    %1258 = vmatpush.msra.mxu0 %v577
    %1259 = vmatpush.msra.mxu0 %v574
    %1260 = vmatmul.f32.gmra.mxu0 %v664
    %v1261 = vpop.f32.mrf.mxu0
    %v1262 = vadd.f32 0.0, %v1261
    %1263 = vmatmul.f32.gmra.mxu0 %v667
    %v1264 = vpop.f32.mrf.mxu0
    %v1265 = vadd.f32 0.0, %v1264
    %1266 = vdwg.mxu0
    %1267 = vmatpush.msra.mxu0 0.0
    %1268 = vmatpush.msra.mxu0 0.0
    %1269 = vmatpush.msra.mxu0 0.0
    %1270 = vmatpush.msra.mxu0 0.0
    %1271 = vmatpush.msra.mxu0 0.0
    %1272 = vmatpush.msra.mxu0 0.0
    %1273 = vmatpush.msra.mxu0 0.0
    %1274 = vmatpush.msra.mxu0 0.0
    %1275 = vmatpush.msra.mxu0 0.0
    %1276 = vmatpush.msra.mxu0 0.0
    %1277 = vmatpush.msra.mxu0 0.0
    %1278 = vmatpush.msra.mxu0 0.0
    %1279 = vmatpush.msra.mxu0 0.0
    %1280 = vmatpush.msra.mxu0 0.0
    %1281 = vmatpush.msra.mxu0 %v583
    %1282 = vmatpush.msra.mxu0 %v580
    %1283 = vmatmul.f32.gmra.mxu0 %v664
    %v1284 = vpop.f32.mrf.mxu0
    %v1285 = vadd.f32 0.0, %v1284
    %1286 = vmatmul.f32.gmra.mxu0 %v667
    %v1287 = vpop.f32.mrf.mxu0
    %v1288 = vadd.f32 0.0, %v1287
    %1289 = vdwg.mxu0
    %1290 = vmatpush.msra.mxu0 0.0
    %1291 = vmatpush.msra.mxu0 0.0
    %1292 = vmatpush.msra.mxu0 0.0
    %1293 = vmatpush.msra.mxu0 0.0
    %1294 = vmatpush.msra.mxu0 0.0
    %1295 = vmatpush.msra.mxu0 0.0
    %1296 = vmatpush.msra.mxu0 0.0
    %1297 = vmatpush.msra.mxu0 0.0
    %1298 = vmatpush.msra.mxu0 0.0
    %1299 = vmatpush.msra.mxu0 0.0
    %1300 = vmatpush.msra.mxu0 0.0
    %1301 = vmatpush.msra.mxu0 0.0
    %1302 = vmatpush.msra.mxu0 0.0
    %1303 = vmatpush.msra.mxu0 0.0
    %1304 = vmatpush.msra.mxu0 %v589
    %1305 = vmatpush.msra.mxu0 %v586
    %1306 = vmatmul.f32.gmra.mxu0 %v664
    %v1307 = vpop.f32.mrf.mxu0
    %v1308 = vadd.f32 0.0, %v1307
    %1309 = vmatmul.f32.gmra.mxu0 %v667
    %v1310 = vpop.f32.mrf.mxu0
    %v1311 = vadd.f32 0.0, %v1310
    %1312 = vdwg.mxu0
    %1313 = vmatpush.msra.mxu0 0.0
    %1314 = vmatpush.msra.mxu0 0.0
    %1315 = vmatpush.msra.mxu0 0.0
    %1316 = vmatpush.msra.mxu0 0.0
    %1317 = vmatpush.msra.mxu0 0.0
    %1318 = vmatpush.msra.mxu0 0.0
    %1319 = vmatpush.msra.mxu0 0.0
    %1320 = vmatpush.msra.mxu0 0.0
    %1321 = vmatpush.msra.mxu0 0.0
    %1322 = vmatpush.msra.mxu0 0.0
    %1323 = vmatpush.msra.mxu0 0.0
    %1324 = vmatpush.msra.mxu0 0.0
    %1325 = vmatpush.msra.mxu0 0.0
    %1326 = vmatpush.msra.mxu0 0.0
    %1327 = vmatpush.msra.mxu0 %v595
    %1328 = vmatpush.msra.mxu0 %v592
    %1329 = vmatmul.f32.gmra.mxu0 %v664
    %v1330 = vpop.f32.mrf.mxu0
    %v1331 = vadd.f32 0.0, %v1330
    %1332 = vmatmul.f32.gmra.mxu0 %v667
    %v1333 = vpop.f32.mrf.mxu0
    %v1334 = vadd.f32 0.0, %v1333
    %1335 = vdwg.mxu0
    %1336 = vmatpush.msra.mxu0 0.0
    %1337 = vmatpush.msra.mxu0 0.0
    %1338 = vmatpush.msra.mxu0 0.0
    %1339 = vmatpush.msra.mxu0 0.0
    %1340 = vmatpush.msra.mxu0 0.0
    %1341 = vmatpush.msra.mxu0 0.0
    %1342 = vmatpush.msra.mxu0 0.0
    %1343 = vmatpush.msra.mxu0 0.0
    %1344 = vmatpush.msra.mxu0 0.0
    %1345 = vmatpush.msra.mxu0 0.0
    %1346 = vmatpush.msra.mxu0 0.0
    %1347 = vmatpush.msra.mxu0 0.0
    %1348 = vmatpush.msra.mxu0 0.0
    %1349 = vmatpush.msra.mxu0 0.0
    %1350 = vmatpush.msra.mxu0 %v601
    %1351 = vmatpush.msra.mxu0 %v598
    %1352 = vmatmul.f32.gmra.mxu0 %v664
    %v1353 = vpop.f32.mrf.mxu0
    %v1354 = vadd.f32 0.0, %v1353
    %1355 = vmatmul.f32.gmra.mxu0 %v667
    %v1356 = vpop.f32.mrf.mxu0
    %v1357 = vadd.f32 0.0, %v1356
    %1358 = vdwg.mxu0
    %1359 = vmatpush.msra.mxu0 0.0
    %1360 = vmatpush.msra.mxu0 0.0
    %1361 = vmatpush.msra.mxu0 0.0
    %1362 = vmatpush.msra.mxu0 0.0
    %1363 = vmatpush.msra.mxu0 0.0
    %1364 = vmatpush.msra.mxu0 0.0
    %1365 = vmatpush.msra.mxu0 0.0
    %1366 = vmatpush.msra.mxu0 0.0
    %1367 = vmatpush.msra.mxu0 0.0
    %1368 = vmatpush.msra.mxu0 0.0
    %1369 = vmatpush.msra.mxu0 0.0
    %1370 = vmatpush.msra.mxu0 0.0
    %1371 = vmatpush.msra.mxu0 0.0
    %1372 = vmatpush.msra.mxu0 0.0
    %1373 = vmatpush.msra.mxu0 %v607
    %1374 = vmatpush.msra.mxu0 %v604
    %1375 = vmatmul.f32.gmra.mxu0 %v664
    %v1376 = vpop.f32.mrf.mxu0
    %v1377 = vadd.f32 0.0, %v1376
    %1378 = vmatmul.f32.gmra.mxu0 %v667
    %v1379 = vpop.f32.mrf.mxu0
    %v1380 = vadd.f32 0.0, %v1379
    %1381 = vdwg.mxu0
    %1382 = vmatpush.msra.mxu0 0.0
    %1383 = vmatpush.msra.mxu0 0.0
    %1384 = vmatpush.msra.mxu0 0.0
    %1385 = vmatpush.msra.mxu0 0.0
    %1386 = vmatpush.msra.mxu0 0.0
    %1387 = vmatpush.msra.mxu0 0.0
    %1388 = vmatpush.msra.mxu0 0.0
    %1389 = vmatpush.msra.mxu0 0.0
    %1390 = vmatpush.msra.mxu0 0.0
    %1391 = vmatpush.msra.mxu0 0.0
    %1392 = vmatpush.msra.mxu0 0.0
    %1393 = vmatpush.msra.mxu0 0.0
    %1394 = vmatpush.msra.mxu0 0.0
    %1395 = vmatpush.msra.mxu0 0.0
    %1396 = vmatpush.msra.mxu0 %v613
    %1397 = vmatpush.msra.mxu0 %v610
    %1398 = vmatmul.f32.gmra.mxu0 %v664
    %v1399 = vpop.f32.mrf.mxu0
    %v1400 = vadd.f32 0.0, %v1399
    %1401 = vmatmul.f32.gmra.mxu0 %v667
    %v1402 = vpop.f32.mrf.mxu0
    %v1403 = vadd.f32 0.0, %v1402
    %1404 = vdwg.mxu0
    %1405 = vmatpush.msra.mxu0 0.0
    %1406 = vmatpush.msra.mxu0 0.0
    %1407 = vmatpush.msra.mxu0 0.0
    %1408 = vmatpush.msra.mxu0 0.0
    %1409 = vmatpush.msra.mxu0 0.0
    %1410 = vmatpush.msra.mxu0 0.0
    %1411 = vmatpush.msra.mxu0 0.0
    %1412 = vmatpush.msra.mxu0 0.0
    %1413 = vmatpush.msra.mxu0 0.0
    %1414 = vmatpush.msra.mxu0 0.0
    %1415 = vmatpush.msra.mxu0 0.0
    %1416 = vmatpush.msra.mxu0 0.0
    %1417 = vmatpush.msra.mxu0 0.0
    %1418 = vmatpush.msra.mxu0 0.0
    %1419 = vmatpush.msra.mxu0 %v619
    %1420 = vmatpush.msra.mxu0 %v616
    %1421 = vmatmul.f32.gmra.mxu0 %v664
    %v1422 = vpop.f32.mrf.mxu0
    %v1423 = vadd.f32 0.0, %v1422
    %1424 = vmatmul.f32.gmra.mxu0 %v667
    %v1425 = vpop.f32.mrf.mxu0
    %v1426 = vadd.f32 0.0, %v1425
    %1427 = vdwg.mxu0
    %1428 = vmatpush.msra.mxu0 0.0
    %1429 = vmatpush.msra.mxu0 0.0
    %1430 = vmatpush.msra.mxu0 0.0
    %1431 = vmatpush.msra.mxu0 0.0
    %1432 = vmatpush.msra.mxu0 0.0
    %1433 = vmatpush.msra.mxu0 0.0
    %1434 = vmatpush.msra.mxu0 0.0
    %1435 = vmatpush.msra.mxu0 0.0
    %1436 = vmatpush.msra.mxu0 0.0
    %1437 = vmatpush.msra.mxu0 0.0
    %1438 = vmatpush.msra.mxu0 0.0
    %1439 = vmatpush.msra.mxu0 0.0
    %1440 = vmatpush.msra.mxu0 0.0
    %1441 = vmatpush.msra.mxu0 0.0
    %1442 = vmatpush.msra.mxu0 %v625
    %1443 = vmatpush.msra.mxu0 %v622
    %1444 = vmatmul.f32.gmra.mxu0 %v664
    %v1445 = vpop.f32.mrf.mxu0
    %v1446 = vadd.f32 0.0, %v1445
    %1447 = vmatmul.f32.gmra.mxu0 %v667
    %v1448 = vpop.f32.mrf.mxu0
    %v1449 = vadd.f32 0.0, %v1448
    %1450 = vdwg.mxu0
    %1451 = vmatpush.msra.mxu0 0.0
    %1452 = vmatpush.msra.mxu0 0.0
    %1453 = vmatpush.msra.mxu0 0.0
    %1454 = vmatpush.msra.mxu0 0.0
    %1455 = vmatpush.msra.mxu0 0.0
    %1456 = vmatpush.msra.mxu0 0.0
    %1457 = vmatpush.msra.mxu0 0.0
    %1458 = vmatpush.msra.mxu0 0.0
    %1459 = vmatpush.msra.mxu0 0.0
    %1460 = vmatpush.msra.mxu0 0.0
    %1461 = vmatpush.msra.mxu0 0.0
    %1462 = vmatpush.msra.mxu0 0.0
    %1463 = vmatpush.msra.mxu0 0.0
    %1464 = vmatpush.msra.mxu0 0.0
    %1465 = vmatpush.msra.mxu0 %v631
    %1466 = vmatpush.msra.mxu0 %v628
    %1467 = vmatmul.f32.gmra.mxu0 %v664
    %v1468 = vpop.f32.mrf.mxu0
    %v1469 = vadd.f32 0.0, %v1468
    %1470 = vmatmul.f32.gmra.mxu0 %v667
    %v1471 = vpop.f32.mrf.mxu0
    %v1472 = vadd.f32 0.0, %v1471
    %1473 = vdwg.mxu0
    %1474 = vmatpush.msra.mxu0 0.0
    %1475 = vmatpush.msra.mxu0 0.0
    %1476 = vmatpush.msra.mxu0 0.0
    %1477 = vmatpush.msra.mxu0 0.0
    %1478 = vmatpush.msra.mxu0 0.0
    %1479 = vmatpush.msra.mxu0 0.0
    %1480 = vmatpush.msra.mxu0 0.0
    %1481 = vmatpush.msra.mxu0 0.0
    %1482 = vmatpush.msra.mxu0 0.0
    %1483 = vmatpush.msra.mxu0 0.0
    %1484 = vmatpush.msra.mxu0 0.0
    %1485 = vmatpush.msra.mxu0 0.0
    %1486 = vmatpush.msra.mxu0 0.0
    %1487 = vmatpush.msra.mxu0 0.0
    %1488 = vmatpush.msra.mxu0 %v637
    %1489 = vmatpush.msra.mxu0 %v634
    %1490 = vmatmul.f32.gmra.mxu0 %v664
    %v1491 = vpop.f32.mrf.mxu0
    %v1492 = vadd.f32 0.0, %v1491
    %1493 = vmatmul.f32.gmra.mxu0 %v667
    %v1494 = vpop.f32.mrf.mxu0
    %v1495 = vadd.f32 0.0, %v1494
    %1496 = vdwg.mxu0
    %1497 = vmatpush.msra.mxu0 0.0
    %1498 = vmatpush.msra.mxu0 0.0
    %1499 = vmatpush.msra.mxu0 0.0
    %1500 = vmatpush.msra.mxu0 0.0
    %1501 = vmatpush.msra.mxu0 0.0
    %1502 = vmatpush.msra.mxu0 0.0
    %1503 = vmatpush.msra.mxu0 0.0
    %1504 = vmatpush.msra.mxu0 0.0
    %1505 = vmatpush.msra.mxu0 0.0
    %1506 = vmatpush.msra.mxu0 0.0
    %1507 = vmatpush.msra.mxu0 0.0
    %1508 = vmatpush.msra.mxu0 0.0
    %1509 = vmatpush.msra.mxu0 0.0
    %1510 = vmatpush.msra.mxu0 0.0
    %1511 = vmatpush.msra.mxu0 %v643
    %1512 = vmatpush.msra.mxu0 %v640
    %1513 = vmatmul.f32.gmra.mxu0 %v664
    %v1514 = vpop.f32.mrf.mxu0
    %v1515 = vadd.f32 0.0, %v1514
    %1516 = vmatmul.f32.gmra.mxu0 %v667
    %v1517 = vpop.f32.mrf.mxu0
    %v1518 = vadd.f32 0.0, %v1517
    %1519 = vdwg.mxu0
    %1520 = vmatpush.msra.mxu0 0.0
    %1521 = vmatpush.msra.mxu0 0.0
    %1522 = vmatpush.msra.mxu0 0.0
    %1523 = vmatpush.msra.mxu0 0.0
    %1524 = vmatpush.msra.mxu0 0.0
    %1525 = vmatpush.msra.mxu0 0.0
    %1526 = vmatpush.msra.mxu0 0.0
    %1527 = vmatpush.msra.mxu0 0.0
    %1528 = vmatpush.msra.mxu0 0.0
    %1529 = vmatpush.msra.mxu0 0.0
    %1530 = vmatpush.msra.mxu0 0.0
    %1531 = vmatpush.msra.mxu0 0.0
    %1532 = vmatpush.msra.mxu0 0.0
    %1533 = vmatpush.msra.mxu0 0.0
    %1534 = vmatpush.msra.mxu0 %v649
    %1535 = vmatpush.msra.mxu0 %v646
    %1536 = vmatmul.f32.gmra.mxu0 %v664
    %v1537 = vpop.f32.mrf.mxu0
    %v1538 = vadd.f32 0.0, %v1537
    %1539 = vmatmul.f32.gmra.mxu0 %v667
    %v1540 = vpop.f32.mrf.mxu0
    %v1541 = vadd.f32 0.0, %v1540
    %1542 = vdwg.mxu0
    %1543 = vmatpush.msra.mxu0 0.0
    %1544 = vmatpush.msra.mxu0 0.0
    %1545 = vmatpush.msra.mxu0 0.0
    %1546 = vmatpush.msra.mxu0 0.0
    %1547 = vmatpush.msra.mxu0 0.0
    %1548 = vmatpush.msra.mxu0 0.0
    %1549 = vmatpush.msra.mxu0 0.0
    %1550 = vmatpush.msra.mxu0 0.0
    %1551 = vmatpush.msra.mxu0 0.0
    %1552 = vmatpush.msra.mxu0 0.0
    %1553 = vmatpush.msra.mxu0 0.0
    %1554 = vmatpush.msra.mxu0 0.0
    %1555 = vmatpush.msra.mxu0 0.0
    %1556 = vmatpush.msra.mxu0 0.0
    %1557 = vmatpush.msra.mxu0 %v655
    %1558 = vmatpush.msra.mxu0 %v652
    %1559 = vmatmul.f32.gmra.mxu0 %v664
    %v1560 = vpop.f32.mrf.mxu0
    %v1561 = vadd.f32 0.0, %v1560
    %1562 = vmatmul.f32.gmra.mxu0 %v667
    %v1563 = vpop.f32.mrf.mxu0
    %v1564 = vadd.f32 0.0, %v1563
    %1565 = vdwg.mxu0
    %1566 = vmatpush.msra.mxu0 0.0
    %1567 = vmatpush.msra.mxu0 0.0
    %1568 = vmatpush.msra.mxu0 0.0
    %1569 = vmatpush.msra.mxu0 0.0
    %1570 = vmatpush.msra.mxu0 0.0
    %1571 = vmatpush.msra.mxu0 0.0
    %1572 = vmatpush.msra.mxu0 0.0
    %1573 = vmatpush.msra.mxu0 0.0
    %1574 = vmatpush.msra.mxu0 0.0
    %1575 = vmatpush.msra.mxu0 0.0
    %1576 = vmatpush.msra.mxu0 0.0
    %1577 = vmatpush.msra.mxu0 0.0
    %1578 = vmatpush.msra.mxu0 0.0
    %1579 = vmatpush.msra.mxu0 0.0
    %1580 = vmatpush.msra.mxu0 %v661
    %1581 = vmatpush.msra.mxu0 %v658
    %1582 = vmatmul.f32.gmra.mxu0 %v664
    %v1583 = vpop.f32.mrf.mxu0
    %v1584 = vadd.f32 0.0, %v1583
    %1585 = vmatmul.f32.gmra.mxu0 %v667
    %v1586 = vpop.f32.mrf.mxu0
    %v1587 = vadd.f32 0.0, %v1586
    %1588 = vdwg.mxu0
    %v1589 = vmul.f32 %v687, %v687
    %v1590 = vmul.f32 %v690, %v690
    %v1591 = vmul.f32 %v710, %v710
    %v1592 = vmul.f32 %v713, %v713
    %v1593 = vmul.f32 %v733, %v733
    %v1594 = vmul.f32 %v736, %v736
    %v1595 = vmul.f32 %v756, %v756
    %v1596 = vmul.f32 %v759, %v759
    %v1597 = vmul.f32 %v779, %v779
    %v1598 = vmul.f32 %v782, %v782
    %v1599 = vmul.f32 %v802, %v802
    %v1600 = vmul.f32 %v805, %v805
    %v1601 = vmul.f32 %v825, %v825
    %v1602 = vmul.f32 %v828, %v828
    %v1603 = vmul.f32 %v848, %v848
    %v1604 = vmul.f32 %v851, %v851
    %v1605 = vmul.f32 %v871, %v871
    %v1606 = vmul.f32 %v874, %v874
    %v1607 = vmul.f32 %v894, %v894
    %v1608 = vmul.f32 %v897, %v897
    %v1609 = vmul.f32 %v917, %v917
    %v1610 = vmul.f32 %v920, %v920
    %v1611 = vmul.f32 %v940, %v940
    %v1612 = vmul.f32 %v943, %v943
    %v1613 = vmul.f32 %v963, %v963
    %v1614 = vmul.f32 %v966, %v966
    %v1615 = vmul.f32 %v986, %v986
    %v1616 = vmul.f32 %v989, %v989
    %v1617 = vmul.f32 %v1009, %v1009
    %v1618 = vmul.f32 %v1012, %v1012
    %v1619 = vmul.f32 %v1032, %v1032
    %v1620 = vmul.f32 %v1035, %v1035
    %v1621 = vmul.f32 %v687, %v871
    %v1622 = vmul.f32 %v690, %v874
    %v1623 = vmul.f32 %v710, %v894
    %v1624 = vmul.f32 %v713, %v897
    %v1625 = vmul.f32 %v733, %v917
    %v1626 = vmul.f32 %v736, %v920
    %v1627 = vmul.f32 %v756, %v940
    %v1628 = vmul.f32 %v759, %v943
    %v1629 = vmul.f32 %v779, %v963
    %v1630 = vmul.f32 %v782, %v966
    %v1631 = vmul.f32 %v802, %v986
    %v1632 = vmul.f32 %v805, %v989
    %v1633 = vmul.f32 %v825, %v1009
    %v1634 = vmul.f32 %v828, %v1012
    %v1635 = vmul.f32 %v848, %v1032
    %v1636 = vmul.f32 %v851, %v1035
    %v1637 = vsub.f32 %v1055, %v1589
    %v1638 = vsub.f32 %v1058, %v1590
    %v1639 = vsub.f32 %v1078, %v1591
    %v1640 = vsub.f32 %v1081, %v1592
    %v1641 = vsub.f32 %v1101, %v1593
    %v1642 = vsub.f32 %v1104, %v1594
    %v1643 = vsub.f32 %v1124, %v1595
    %v1644 = vsub.f32 %v1127, %v1596
    %v1645 = vsub.f32 %v1147, %v1597
    %v1646 = vsub.f32 %v1150, %v1598
    %v1647 = vsub.f32 %v1170, %v1599
    %v1648 = vsub.f32 %v1173, %v1600
    %v1649 = vsub.f32 %v1193, %v1601
    %v1650 = vsub.f32 %v1196, %v1602
    %v1651 = vsub.f32 %v1216, %v1603
    %v1652 = vsub.f32 %v1219, %v1604
    %v1653 = vsub.f32 %v1239, %v1605
    %v1654 = vsub.f32 %v1242, %v1606
    %v1655 = vsub.f32 %v1262, %v1607
    %v1656 = vsub.f32 %v1265, %v1608
    %v1657 = vsub.f32 %v1285, %v1609
    %v1658 = vsub.f32 %v1288, %v1610
    %v1659 = vsub.f32 %v1308, %v1611
    %v1660 = vsub.f32 %v1311, %v1612
    %v1661 = vsub.f32 %v1331, %v1613
    %v1662 = vsub.f32 %v1334, %v1614
    %v1663 = vsub.f32 %v1354, %v1615
    %v1664 = vsub.f32 %v1357, %v1616
    %v1665 = vsub.f32 %v1377, %v1617
    %v1666 = vsub.f32 %v1380, %v1618
    %v1667 = vsub.f32 %v1400, %v1619
    %v1668 = vsub.f32 %v1403, %v1620
    %v1669 = vsub.f32 %v1423, %v1621
    %v1670 = vsub.f32 %v1426, %v1622
    %v1671 = vsub.f32 %v1446, %v1623
    %v1672 = vsub.f32 %v1449, %v1624
    %v1673 = vsub.f32 %v1469, %v1625
    %v1674 = vsub.f32 %v1472, %v1626
    %v1675 = vsub.f32 %v1492, %v1627
    %v1676 = vsub.f32 %v1495, %v1628
    %v1677 = vsub.f32 %v1515, %v1629
    %v1678 = vsub.f32 %v1518, %v1630
    %v1679 = vsub.f32 %v1538, %v1631
    %v1680 = vsub.f32 %v1541, %v1632
    %v1681 = vsub.f32 %v1561, %v1633
    %v1682 = vsub.f32 %v1564, %v1634
    %v1683 = vsub.f32 %v1584, %v1635
    %v1684 = vsub.f32 %v1587, %v1636
    %v1685 = vmul.f32 %v1621, 2.0
    %v1686 = vmul.f32 %v1622, 2.0
    %v1687 = vmul.f32 %v1623, 2.0
    %v1688 = vmul.f32 %v1624, 2.0
    %v1689 = vmul.f32 %v1625, 2.0
    %v1690 = vmul.f32 %v1626, 2.0
    %v1691 = vmul.f32 %v1627, 2.0
    %v1692 = vmul.f32 %v1628, 2.0
    %v1693 = vmul.f32 %v1629, 2.0
    %v1694 = vmul.f32 %v1630, 2.0
    %v1695 = vmul.f32 %v1631, 2.0
    %v1696 = vmul.f32 %v1632, 2.0
    %v1697 = vmul.f32 %v1633, 2.0
    %v1698 = vmul.f32 %v1634, 2.0
    %v1699 = vmul.f32 %v1635, 2.0
    %v1700 = vmul.f32 %v1636, 2.0
    %v1701 = vadd.f32 %v1685, 0.0001
    %v1702 = vadd.f32 %v1686, 0.0001
    %v1703 = vadd.f32 %v1687, 0.0001
    %v1704 = vadd.f32 %v1688, 0.0001
    %v1705 = vadd.f32 %v1689, 0.0001
    %v1706 = vadd.f32 %v1690, 0.0001
    %v1707 = vadd.f32 %v1691, 0.0001
    %v1708 = vadd.f32 %v1692, 0.0001
    %v1709 = vadd.f32 %v1693, 0.0001
    %v1710 = vadd.f32 %v1694, 0.0001
    %v1711 = vadd.f32 %v1695, 0.0001
    %v1712 = vadd.f32 %v1696, 0.0001
    %v1713 = vadd.f32 %v1697, 0.0001
    %v1714 = vadd.f32 %v1698, 0.0001
    %v1715 = vadd.f32 %v1699, 0.0001
    %v1716 = vadd.f32 %v1700, 0.0001
    %v1717 = vmul.f32 %v1669, 2.0
    %v1718 = vmul.f32 %v1670, 2.0
    %v1719 = vmul.f32 %v1671, 2.0
    %v1720 = vmul.f32 %v1672, 2.0
    %v1721 = vmul.f32 %v1673, 2.0
    %v1722 = vmul.f32 %v1674, 2.0
    %v1723 = vmul.f32 %v1675, 2.0
    %v1724 = vmul.f32 %v1676, 2.0
    %v1725 = vmul.f32 %v1677, 2.0
    %v1726 = vmul.f32 %v1678, 2.0
    %v1727 = vmul.f32 %v1679, 2.0
    %v1728 = vmul.f32 %v1680, 2.0
    %v1729 = vmul.f32 %v1681, 2.0
    %v1730 = vmul.f32 %v1682, 2.0
    %v1731 = vmul.f32 %v1683, 2.0
    %v1732 = vmul.f32 %v1684, 2.0
    %v1733 = vadd.f32 %v1717, 0.0009
    %v1734 = vadd.f32 %v1718, 0.0009
    %v1735 = vadd.f32 %v1719, 0.0009
    %v1736 = vadd.f32 %v1720, 0.0009
    %v1737 = vadd.f32 %v1721, 0.0009
    %v1738 = vadd.f32 %v1722, 0.0009
    %v1739 = vadd.f32 %v1723, 0.0009
    %v1740 = vadd.f32 %v1724, 0.0009
    %v1741 = vadd.f32 %v1725, 0.0009
    %v1742 = vadd.f32 %v1726, 0.0009
    %v1743 = vadd.f32 %v1727, 0.0009
    %v1744 = vadd.f32 %v1728, 0.0009
    %v1745 = vadd.f32 %v1729, 0.0009
    %v1746 = vadd.f32 %v1730, 0.0009
    %v1747 = vadd.f32 %v1731, 0.0009
    %v1748 = vadd.f32 %v1732, 0.0009
    %v1749 = vmul.f32 %v1701, %v1733
    %v1750 = vmul.f32 %v1702, %v1734
    %v1751 = vmul.f32 %v1703, %v1735
    %v1752 = vmul.f32 %v1704, %v1736
    %v1753 = vmul.f32 %v1705, %v1737
    %v1754 = vmul.f32 %v1706, %v1738
    %v1755 = vmul.f32 %v1707, %v1739
    %v1756 = vmul.f32 %v1708, %v1740
    %v1757 = vmul.f32 %v1709, %v1741
    %v1758 = vmul.f32 %v1710, %v1742
    %v1759 = vmul.f32 %v1711, %v1743
    %v1760 = vmul.f32 %v1712, %v1744
    %v1761 = vmul.f32 %v1713, %v1745
    %v1762 = vmul.f32 %v1714, %v1746
    %v1763 = vmul.f32 %v1715, %v1747
    %v1764 = vmul.f32 %v1716, %v1748
    %v1765 = vadd.f32 %v1589, %v1605
    %v1766 = vadd.f32 %v1590, %v1606
    %v1767 = vadd.f32 %v1591, %v1607
    %v1768 = vadd.f32 %v1592, %v1608
    %v1769 = vadd.f32 %v1593, %v1609
    %v1770 = vadd.f32 %v1594, %v1610
    %v1771 = vadd.f32 %v1595, %v1611
    %v1772 = vadd.f32 %v1596, %v1612
    %v1773 = vadd.f32 %v1597, %v1613
    %v1774 = vadd.f32 %v1598, %v1614
    %v1775 = vadd.f32 %v1599, %v1615
    %v1776 = vadd.f32 %v1600, %v1616
    %v1777 = vadd.f32 %v1601, %v1617
    %v1778 = vadd.f32 %v1602, %v1618
    %v1779 = vadd.f32 %v1603, %v1619
    %v1780 = vadd.f32 %v1604, %v1620
    %v1781 = vadd.f32 %v1765, 0.0001
    %v1782 = vadd.f32 %v1766, 0.0001
    %v1783 = vadd.f32 %v1767, 0.0001
    %v1784 = vadd.f32 %v1768, 0.0001
    %v1785 = vadd.f32 %v1769, 0.0001
    %v1786 = vadd.f32 %v1770, 0.0001
    %v1787 = vadd.f32 %v1771, 0.0001
    %v1788 = vadd.f32 %v1772, 0.0001
    %v1789 = vadd.f32 %v1773, 0.0001
    %v1790 = vadd.f32 %v1774, 0.0001
    %v1791 = vadd.f32 %v1775, 0.0001
    %v1792 = vadd.f32 %v1776, 0.0001
    %v1793 = vadd.f32 %v1777, 0.0001
    %v1794 = vadd.f32 %v1778, 0.0001
    %v1795 = vadd.f32 %v1779, 0.0001
    %v1796 = vadd.f32 %v1780, 0.0001
    %v1797 = vadd.f32 %v1637, %v1653
    %v1798 = vadd.f32 %v1638, %v1654
    %v1799 = vadd.f32 %v1639, %v1655
    %v1800 = vadd.f32 %v1640, %v1656
    %v1801 = vadd.f32 %v1641, %v1657
    %v1802 = vadd.f32 %v1642, %v1658
    %v1803 = vadd.f32 %v1643, %v1659
    %v1804 = vadd.f32 %v1644, %v1660
    %v1805 = vadd.f32 %v1645, %v1661
    %v1806 = vadd.f32 %v1646, %v1662
    %v1807 = vadd.f32 %v1647, %v1663
    %v1808 = vadd.f32 %v1648, %v1664
    %v1809 = vadd.f32 %v1649, %v1665
    %v1810 = vadd.f32 %v1650, %v1666
    %v1811 = vadd.f32 %v1651, %v1667
    %v1812 = vadd.f32 %v1652, %v1668
    %v1813 = vadd.f32 %v1797, 0.0009
    %v1814 = vadd.f32 %v1798, 0.0009
    %v1815 = vadd.f32 %v1799, 0.0009
    %v1816 = vadd.f32 %v1800, 0.0009
    %v1817 = vadd.f32 %v1801, 0.0009
    %v1818 = vadd.f32 %v1802, 0.0009
    %v1819 = vadd.f32 %v1803, 0.0009
    %v1820 = vadd.f32 %v1804, 0.0009
    %v1821 = vadd.f32 %v1805, 0.0009
    %v1822 = vadd.f32 %v1806, 0.0009
    %v1823 = vadd.f32 %v1807, 0.0009
    %v1824 = vadd.f32 %v1808, 0.0009
    %v1825 = vadd.f32 %v1809, 0.0009
    %v1826 = vadd.f32 %v1810, 0.0009
    %v1827 = vadd.f32 %v1811, 0.0009
    %v1828 = vadd.f32 %v1812, 0.0009
    %v1829 = vmul.f32 %v1781, %v1813
    %v1830 = vmul.f32 %v1782, %v1814
    %v1831 = vmul.f32 %v1783, %v1815
    %v1832 = vmul.f32 %v1784, %v1816
    %v1833 = vmul.f32 %v1785, %v1817
    %v1834 = vmul.f32 %v1786, %v1818
    %v1835 = vmul.f32 %v1787, %v1819
    %v1836 = vmul.f32 %v1788, %v1820
    %v1837 = vmul.f32 %v1789, %v1821
    %v1838 = vmul.f32 %v1790, %v1822
    %v1839 = vmul.f32 %v1791, %v1823
    %v1840 = vmul.f32 %v1792, %v1824
    %v1841 = vmul.f32 %v1793, %v1825
    %v1842 = vmul.f32 %v1794, %v1826
    %v1843 = vmul.f32 %v1795, %v1827
    %v1844 = vmul.f32 %v1796, %v1828
    %v1845 = vrcp.pop %v1829
    %v1846 = vmul.f32 %v1829, %v1845
    %v1847 = vsub.f32 1.0, %v1846
    %v1848 = vmul.f32 %v1845, %v1847
    %v1849 = vadd.f32 %v1845, %v1848
    %vm1850 = vweird.f32 %v1829
    %vm1851 = vweird.f32 %v1845
    %vm1852 = vmor %vm1850, %vm1851
    %v1853 = vsel %vm1852, %v1845, %v1849
    %v1854 = vand.u32 2147483647, %v1829
    %vm1855 = vcmp.eq.f32.partialorder %v1854, 8.507059e+37
    %v1856 = vand.u32 %v1829, 2147483648
    %v1857 = vor.u32 1.1754944e-38, %v1856
    %v1858 = vsel %vm1855, %v1857, %v1853
    %v1859 = vrcp.pop %v1830
    %v1860 = vmul.f32 %v1830, %v1859
    %v1861 = vsub.f32 1.0, %v1860
    %v1862 = vmul.f32 %v1859, %v1861
    %v1863 = vadd.f32 %v1859, %v1862
    %vm1864 = vweird.f32 %v1830
    %vm1865 = vweird.f32 %v1859
    %vm1866 = vmor %vm1864, %vm1865
    %v1867 = vsel %vm1866, %v1859, %v1863
    %v1868 = vand.u32 2147483647, %v1830
    %vm1869 = vcmp.eq.f32.partialorder %v1868, 8.507059e+37
    %v1870 = vand.u32 %v1830, 2147483648
    %v1871 = vor.u32 1.1754944e-38, %v1870
    %v1872 = vsel %vm1869, %v1871, %v1867
    %v1873 = vrcp.pop %v1831
    %v1874 = vmul.f32 %v1831, %v1873
    %v1875 = vsub.f32 1.0, %v1874
    %v1876 = vmul.f32 %v1873, %v1875
    %v1877 = vadd.f32 %v1873, %v1876
    %vm1878 = vweird.f32 %v1831
    %vm1879 = vweird.f32 %v1873
    %vm1880 = vmor %vm1878, %vm1879
    %v1881 = vsel %vm1880, %v1873, %v1877
    %v1882 = vand.u32 2147483647, %v1831
    %vm1883 = vcmp.eq.f32.partialorder %v1882, 8.507059e+37
    %v1884 = vand.u32 %v1831, 2147483648
    %v1885 = vor.u32 1.1754944e-38, %v1884
    %v1886 = vsel %vm1883, %v1885, %v1881
    %v1887 = vrcp.pop %v1832
    %v1888 = vmul.f32 %v1832, %v1887
    %v1889 = vsub.f32 1.0, %v1888
    %v1890 = vmul.f32 %v1887, %v1889
    %v1891 = vadd.f32 %v1887, %v1890
    %vm1892 = vweird.f32 %v1832
    %vm1893 = vweird.f32 %v1887
    %vm1894 = vmor %vm1892, %vm1893
    %v1895 = vsel %vm1894, %v1887, %v1891
    %v1896 = vand.u32 2147483647, %v1832
    %vm1897 = vcmp.eq.f32.partialorder %v1896, 8.507059e+37
    %v1898 = vand.u32 %v1832, 2147483648
    %v1899 = vor.u32 1.1754944e-38, %v1898
    %v1900 = vsel %vm1897, %v1899, %v1895
    %v1901 = vrcp.pop %v1833
    %v1902 = vmul.f32 %v1833, %v1901
    %v1903 = vsub.f32 1.0, %v1902
    %v1904 = vmul.f32 %v1901, %v1903
    %v1905 = vadd.f32 %v1901, %v1904
    %vm1906 = vweird.f32 %v1833
    %vm1907 = vweird.f32 %v1901
    %vm1908 = vmor %vm1906, %vm1907
    %v1909 = vsel %vm1908, %v1901, %v1905
    %v1910 = vand.u32 2147483647, %v1833
    %vm1911 = vcmp.eq.f32.partialorder %v1910, 8.507059e+37
    %v1912 = vand.u32 %v1833, 2147483648
    %v1913 = vor.u32 1.1754944e-38, %v1912
    %v1914 = vsel %vm1911, %v1913, %v1909
    %v1915 = vrcp.pop %v1834
    %v1916 = vmul.f32 %v1834, %v1915
    %v1917 = vsub.f32 1.0, %v1916
    %v1918 = vmul.f32 %v1915, %v1917
    %v1919 = vadd.f32 %v1915, %v1918
    %vm1920 = vweird.f32 %v1834
    %vm1921 = vweird.f32 %v1915
    %vm1922 = vmor %vm1920, %vm1921
    %v1923 = vsel %vm1922, %v1915, %v1919
    %v1924 = vand.u32 2147483647, %v1834
    %vm1925 = vcmp.eq.f32.partialorder %v1924, 8.507059e+37
    %v1926 = vand.u32 %v1834, 2147483648
    %v1927 = vor.u32 1.1754944e-38, %v1926
    %v1928 = vsel %vm1925, %v1927, %v1923
    %v1929 = vrcp.pop %v1835
    %v1930 = vmul.f32 %v1835, %v1929
    %v1931 = vsub.f32 1.0, %v1930
    %v1932 = vmul.f32 %v1929, %v1931
    %v1933 = vadd.f32 %v1929, %v1932
    %vm1934 = vweird.f32 %v1835
    %vm1935 = vweird.f32 %v1929
    %vm1936 = vmor %vm1934, %vm1935
    %v1937 = vsel %vm1936, %v1929, %v1933
    %v1938 = vand.u32 2147483647, %v1835
    %vm1939 = vcmp.eq.f32.partialorder %v1938, 8.507059e+37
    %v1940 = vand.u32 %v1835, 2147483648
    %v1941 = vor.u32 1.1754944e-38, %v1940
    %v1942 = vsel %vm1939, %v1941, %v1937
    %v1943 = vrcp.pop %v1836
    %v1944 = vmul.f32 %v1836, %v1943
    %v1945 = vsub.f32 1.0, %v1944
    %v1946 = vmul.f32 %v1943, %v1945
    %v1947 = vadd.f32 %v1943, %v1946
    %vm1948 = vweird.f32 %v1836
    %vm1949 = vweird.f32 %v1943
    %vm1950 = vmor %vm1948, %vm1949
    %v1951 = vsel %vm1950, %v1943, %v1947
    %v1952 = vand.u32 2147483647, %v1836
    %vm1953 = vcmp.eq.f32.partialorder %v1952, 8.507059e+37
    %v1954 = vand.u32 %v1836, 2147483648
    %v1955 = vor.u32 1.1754944e-38, %v1954
    %v1956 = vsel %vm1953, %v1955, %v1951
    %v1957 = vrcp.pop %v1837
    %v1958 = vmul.f32 %v1837, %v1957
    %v1959 = vsub.f32 1.0, %v1958
    %v1960 = vmul.f32 %v1957, %v1959
    %v1961 = vadd.f32 %v1957, %v1960
    %vm1962 = vweird.f32 %v1837
    %vm1963 = vweird.f32 %v1957
    %vm1964 = vmor %vm1962, %vm1963
    %v1965 = vsel %vm1964, %v1957, %v1961
    %v1966 = vand.u32 2147483647, %v1837
    %vm1967 = vcmp.eq.f32.partialorder %v1966, 8.507059e+37
    %v1968 = vand.u32 %v1837, 2147483648
    %v1969 = vor.u32 1.1754944e-38, %v1968
    %v1970 = vsel %vm1967, %v1969, %v1965
    %v1971 = vrcp.pop %v1838
    %v1972 = vmul.f32 %v1838, %v1971
    %v1973 = vsub.f32 1.0, %v1972
    %v1974 = vmul.f32 %v1971, %v1973
    %v1975 = vadd.f32 %v1971, %v1974
    %vm1976 = vweird.f32 %v1838
    %vm1977 = vweird.f32 %v1971
    %vm1978 = vmor %vm1976, %vm1977
    %v1979 = vsel %vm1978, %v1971, %v1975
    %v1980 = vand.u32 2147483647, %v1838
    %vm1981 = vcmp.eq.f32.partialorder %v1980, 8.507059e+37
    %v1982 = vand.u32 %v1838, 2147483648
    %v1983 = vor.u32 1.1754944e-38, %v1982
    %v1984 = vsel %vm1981, %v1983, %v1979
    %v1985 = vrcp.pop %v1839
    %v1986 = vmul.f32 %v1839, %v1985
    %v1987 = vsub.f32 1.0, %v1986
    %v1988 = vmul.f32 %v1985, %v1987
    %v1989 = vadd.f32 %v1985, %v1988
    %vm1990 = vweird.f32 %v1839
    %vm1991 = vweird.f32 %v1985
    %vm1992 = vmor %vm1990, %vm1991
    %v1993 = vsel %vm1992, %v1985, %v1989
    %v1994 = vand.u32 2147483647, %v1839
    %vm1995 = vcmp.eq.f32.partialorder %v1994, 8.507059e+37
    %v1996 = vand.u32 %v1839, 2147483648
    %v1997 = vor.u32 1.1754944e-38, %v1996
    %v1998 = vsel %vm1995, %v1997, %v1993
    %v1999 = vrcp.pop %v1840
    %v2000 = vmul.f32 %v1840, %v1999
    %v2001 = vsub.f32 1.0, %v2000
    %v2002 = vmul.f32 %v1999, %v2001
    %v2003 = vadd.f32 %v1999, %v2002
    %vm2004 = vweird.f32 %v1840
    %vm2005 = vweird.f32 %v1999
    %vm2006 = vmor %vm2004, %vm2005
    %v2007 = vsel %vm2006, %v1999, %v2003
    %v2008 = vand.u32 2147483647, %v1840
    %vm2009 = vcmp.eq.f32.partialorder %v2008, 8.507059e+37
    %v2010 = vand.u32 %v1840, 2147483648
    %v2011 = vor.u32 1.1754944e-38, %v2010
    %v2012 = vsel %vm2009, %v2011, %v2007
    %v2013 = vrcp.pop %v1841
    %v2014 = vmul.f32 %v1841, %v2013
    %v2015 = vsub.f32 1.0, %v2014
    %v2016 = vmul.f32 %v2013, %v2015
    %v2017 = vadd.f32 %v2013, %v2016
    %vm2018 = vweird.f32 %v1841
    %vm2019 = vweird.f32 %v2013
    %vm2020 = vmor %vm2018, %vm2019
    %v2021 = vsel %vm2020, %v2013, %v2017
    %v2022 = vand.u32 2147483647, %v1841
    %vm2023 = vcmp.eq.f32.partialorder %v2022, 8.507059e+37
    %v2024 = vand.u32 %v1841, 2147483648
    %v2025 = vor.u32 1.1754944e-38, %v2024
    %v2026 = vsel %vm2023, %v2025, %v2021
    %v2027 = vrcp.pop %v1842
    %v2028 = vmul.f32 %v1842, %v2027
    %v2029 = vsub.f32 1.0, %v2028
    %v2030 = vmul.f32 %v2027, %v2029
    %v2031 = vadd.f32 %v2027, %v2030
    %vm2032 = vweird.f32 %v1842
    %vm2033 = vweird.f32 %v2027
    %vm2034 = vmor %vm2032, %vm2033
    %v2035 = vsel %vm2034, %v2027, %v2031
    %v2036 = vand.u32 2147483647, %v1842
    %vm2037 = vcmp.eq.f32.partialorder %v2036, 8.507059e+37
    %v2038 = vand.u32 %v1842, 2147483648
    %v2039 = vor.u32 1.1754944e-38, %v2038
    %v2040 = vsel %vm2037, %v2039, %v2035
    %v2041 = vrcp.pop %v1843
    %v2042 = vmul.f32 %v1843, %v2041
    %v2043 = vsub.f32 1.0, %v2042
    %v2044 = vmul.f32 %v2041, %v2043
    %v2045 = vadd.f32 %v2041, %v2044
    %vm2046 = vweird.f32 %v1843
    %vm2047 = vweird.f32 %v2041
    %vm2048 = vmor %vm2046, %vm2047
    %v2049 = vsel %vm2048, %v2041, %v2045
    %v2050 = vand.u32 2147483647, %v1843
    %vm2051 = vcmp.eq.f32.partialorder %v2050, 8.507059e+37
    %v2052 = vand.u32 %v1843, 2147483648
    %v2053 = vor.u32 1.1754944e-38, %v2052
    %v2054 = vsel %vm2051, %v2053, %v2049
    %v2055 = vrcp.pop %v1844
    %v2056 = vmul.f32 %v1844, %v2055
    %v2057 = vsub.f32 1.0, %v2056
    %v2058 = vmul.f32 %v2055, %v2057
    %v2059 = vadd.f32 %v2055, %v2058
    %vm2060 = vweird.f32 %v1844
    %vm2061 = vweird.f32 %v2055
    %vm2062 = vmor %vm2060, %vm2061
    %v2063 = vsel %vm2062, %v2055, %v2059
    %v2064 = vand.u32 2147483647, %v1844
    %vm2065 = vcmp.eq.f32.partialorder %v2064, 8.507059e+37
    %v2066 = vand.u32 %v1844, 2147483648
    %v2067 = vor.u32 1.1754944e-38, %v2066
    %v2068 = vsel %vm2065, %v2067, %v2063
    %v2069 = vmul.f32 %v1749, %v1858
    %v2070 = vmul.f32 %v1750, %v1872
    %v2071 = vmul.f32 %v1751, %v1886
    %v2072 = vmul.f32 %v1752, %v1900
    %v2073 = vmul.f32 %v1753, %v1914
    %v2074 = vmul.f32 %v1754, %v1928
    %v2075 = vmul.f32 %v1755, %v1942
    %v2076 = vmul.f32 %v1756, %v1956
    %v2077 = vmul.f32 %v1757, %v1970
    %v2078 = vmul.f32 %v1758, %v1984
    %v2079 = vmul.f32 %v1759, %v1998
    %v2080 = vmul.f32 %v1760, %v2012
    %v2081 = vmul.f32 %v1761, %v2026
    %v2082 = vmul.f32 %v1762, %v2040
    %v2083 = vmul.f32 %v1763, %v2054
    %v2084 = vmul.f32 %v1764, %v2068
    %v2085 = vsub.f32 1.0, %v2069
    %v2086 = vsub.f32 1.0, %v2070
    %v2087 = vsub.f32 1.0, %v2071
    %v2088 = vsub.f32 1.0, %v2072
    %v2089 = vsub.f32 1.0, %v2073
    %v2090 = vsub.f32 1.0, %v2074
    %v2091 = vsub.f32 1.0, %v2075
    %v2092 = vsub.f32 1.0, %v2076
    %v2093 = vsub.f32 1.0, %v2077
    %v2094 = vsub.f32 1.0, %v2078
    %v2095 = vsub.f32 1.0, %v2079
    %v2096 = vsub.f32 1.0, %v2080
    %v2097 = vsub.f32 1.0, %v2081
    %v2098 = vsub.f32 1.0, %v2082
    %v2099 = vsub.f32 1.0, %v2083
    %v2100 = vsub.f32 1.0, %v2084
    %v2101 = vmul.f32 %v2085, 0.5
    %v2102 = vmul.f32 %v2086, 0.5
    %v2103 = vmul.f32 %v2087, 0.5
    %v2104 = vmul.f32 %v2088, 0.5
    %v2105 = vmul.f32 %v2089, 0.5
    %v2106 = vmul.f32 %v2090, 0.5
    %v2107 = vmul.f32 %v2091, 0.5
    %v2108 = vmul.f32 %v2092, 0.5
    %v2109 = vmul.f32 %v2093, 0.5
    %v2110 = vmul.f32 %v2094, 0.5
    %v2111 = vmul.f32 %v2095, 0.5
    %v2112 = vmul.f32 %v2096, 0.5
    %v2113 = vmul.f32 %v2097, 0.5
    %v2114 = vmul.f32 %v2098, 0.5
    %v2115 = vmul.f32 %v2099, 0.5
    %v2116 = vmul.f32 %v2100, 0.5
    %v2117 = vmax.f32 %v2101, 0.0
    %v2118 = vmax.f32 %v2102, 0.0
    %v2119 = vmax.f32 %v2103, 0.0
    %v2120 = vmax.f32 %v2104, 0.0
    %v2121 = vmax.f32 %v2105, 0.0
    %v2122 = vmax.f32 %v2106, 0.0
    %v2123 = vmax.f32 %v2107, 0.0
    %v2124 = vmax.f32 %v2108, 0.0
    %v2125 = vmax.f32 %v2109, 0.0
    %v2126 = vmax.f32 %v2110, 0.0
    %v2127 = vmax.f32 %v2111, 0.0
    %v2128 = vmax.f32 %v2112, 0.0
    %v2129 = vmax.f32 %v2113, 0.0
    %v2130 = vmax.f32 %v2114, 0.0
    %v2131 = vmax.f32 %v2115, 0.0
    %v2132 = vmax.f32 %v2116, 0.0
    %v2133 = vmin.f32 %v2117, 1.0
    %v2134 = vmin.f32 %v2118, 1.0
    %v2135 = vmin.f32 %v2119, 1.0
    %v2136 = vmin.f32 %v2120, 1.0
    %v2137 = vmin.f32 %v2121, 1.0
    %v2138 = vmin.f32 %v2122, 1.0
    %v2139 = vmin.f32 %v2123, 1.0
    %v2140 = vmin.f32 %v2124, 1.0
    %v2141 = vmin.f32 %v2125, 1.0
    %v2142 = vmin.f32 %v2126, 1.0
    %v2143 = vmin.f32 %v2127, 1.0
    %v2144 = vmin.f32 %v2128, 1.0
    %v2145 = vmin.f32 %v2129, 1.0
    %v2146 = vmin.f32 %v2130, 1.0
    %v2147 = vmin.f32 %v2131, 1.0
    %v2148 = vmin.f32 %v2132, 1.0
    %v2149 = vsel %vm165, %v2133, 0.0
    %v2150 = vsel %vm165, %v2134, 0.0
    %v2151 = vadd.f32 %v2149, %v2150
    %v2152 = vsel %vm165, %v2135, 0.0
    %v2153 = vadd.f32 %v2151, %v2152
    %v2154 = vsel %vm165, %v2136, 0.0
    %v2155 = vadd.f32 %v2153, %v2154
    %v2156 = vsel %vm165, %v2137, 0.0
    %v2157 = vadd.f32 %v2155, %v2156
    %v2158 = vsel %vm165, %v2138, 0.0
    %v2159 = vadd.f32 %v2157, %v2158
    %v2160 = vsel %vm165, %v2139, 0.0
    %v2161 = vadd.f32 %v2159, %v2160
    %v2162 = vsel %vm165, %v2140, 0.0
    %v2163 = vadd.f32 %v2161, %v2162
    %v2164 = vsel %vm165, %v2141, 0.0
    %v2165 = vadd.f32 %v2163, %v2164
    %v2166 = vsel %vm165, %v2142, 0.0
    %v2167 = vadd.f32 %v2165, %v2166
    %v2168 = vsel %vm165, %v2143, 0.0
    %v2169 = vadd.f32 %v2167, %v2168
    %v2170 = vsel %vm165, %v2144, 0.0
    %v2171 = vadd.f32 %v2169, %v2170
    %v2172 = vsel %vm165, %v2145, 0.0
    %v2173 = vadd.f32 %v2171, %v2172
    %v2174 = vsel %vm165, %v2146, 0.0
    %v2175 = vadd.f32 %v2173, %v2174
    %v2176 = vsel %vm165, %v2147, 0.0
    %v2177 = vadd.f32 %v2175, %v2176
    %v2178 = vsel %vm165, %v2148, 0.0
    %v2179 = vadd.f32 %v2177, %v2178
    %2180 = vadd.xlane.f32.xlu0 %v2179
    %v2181 = vpop.xlane.xlu0 %2180
    %v2182 = vrot.slane %v2181, 4
    %v2183 = vadd.f32 %v2181, %v2182
    %v2184 = vrot.slane %v2183, 2
    %v2185 = vadd.f32 %v2183, %v2184
    %v2186 = vrot.slane %v2185, 1
    %v2187 = vadd.f32 %v2185, %v2186
    %s2188 = vtos %v2187
    %v2189 = vstv %s2188
    %2190 = vst [vmem:[#allocation10] sm:$0xff] %v2189
    // Predicated region
    $region34: #{tpu_custom_call.1} parent=1 // pred_check
      _
    $region35: #{tpu_custom_call.1} parent=1 // pred_check_branch
      %2192 = sbr.rel (0) target = $region37
    $region36: #{tpu_custom_call.1} parent=1 // pred_region
      %2194 = vsyncadd [#allocation4], 0
      %s2196 = sshll.u32 [#allocation10], 4
      %s2197 = int_to_ptr.vmem [resolvable:$true] %s2196
      %s2198 = sshll.u32 %s4, 4
      %s2199 = int_to_ptr.hbm [resolvable:$true] %s2198
      %2201 = dma.vmem_to_hbm [thread:$0]  %s2197, 128, %s2199, [#allocation4]
    $region37: #{tpu_custom_call.1} parent=1 // pred_fallthru
      _
    // Predicated region
    $region38: #{tpu_custom_call.1} parent=1 // pred_check
      _
    $region39: #{tpu_custom_call.1} parent=1 // pred_check_branch
      %2203 = sbr.rel (0) target = $region41
    $region40: #{tpu_custom_call.1} parent=1 // pred_region
      %2205 = dma.done [#allocation4], 128
    $region41: #{tpu_custom_call.1} parent=1 // pred_fallthru
      _
    %2206 = vsyncpa [#allocation3], 1
    %2207 = vsyncpa [#allocation6], 1
    %2208 = vsyncpa [#allocation9], 1
    %2209 = vsyncpa [#allocation4], 1

</llo_original>
